<compile_context>
chip_gen: v6e
topology: v6e:2x2x1
jax: 0.10.0
libtpu: 0.0.40
codegen_flags: <defaults>
</compile_context>

<pallas_src>
import functools

import jax
import jax.numpy as jnp
from jax import lax
from jax.experimental import pallas as pl
from jax.experimental.pallas import tpu as pltpu


def _inverted_residual_kernel(
    x_ref,       # (1, Cin, P)    padded, channel-major, spatially flattened input (f32)
    mask_ref,    # (1, P)         1.0 on interior (valid) positions, 0.0 on the halo
    w_exp_ref,   # (9, Chid, Cin) expand-conv taps, BN1 scale folded (bf16)
    b1_ref,      # (Chid, 1)      BN1 bias
    w_dw_ref,    # (9, Chid, 1)   depthwise taps, BN2 scale folded (f32)
    b2_ref,      # (Chid, 1)      BN2 bias
    w_se1_ref,   # (Chid, Cr)     SE reduce weight
    b_se1_ref,   # (1, Cr)        SE reduce bias
    w_se2_ref,   # (Chid, Cr)     SE expand weight (transposed)
    b_se2_ref,   # (Chid, 1)      SE expand bias
    w_pw_ref,    # (Cout, Chid)   projection weight (transposed), BN3 scale folded (bf16)
    b3_ref,      # (Cout, 1)      BN3 bias
    o_ref,       # (1, Cout, P)   padded, channel-major, flattened output (f32)
    *, H, W, expand, use_residual):
  Wp = W + 2
  P = (H + 2) * Wp
  HW = H * W
  # Flat-lane offsets of the 9 conv taps (kh, kw) relative to an output pixel.
  shifts = tuple((kh - 1) * Wp + (kw - 1) for kh in range(3) for kw in range(3))

  def shifted(a, s):
    # y[:, q] = a[:, q + s] wherever q + s is in range; other lanes are zero.
    # Interior (mask==1) positions q always have q + s in [0, P), so the
    # zero-filled lanes never contribute to a valid conv output.
    c = a.shape[0]
    if s == 0:
      return a
    if s > 0:
      return jnp.concatenate([a[:, s:], jnp.zeros((c, s), a.dtype)], axis=1)
    return jnp.concatenate([jnp.zeros((c, -s), a.dtype), a[:, :P + s]], axis=1)

  x = x_ref[0]              # (Cin, P) -- only a handful of f32 vregs
  mask = mask_ref[...]      # (1, P)

  if expand:
    # ---- expand 3x3 conv (stride 1, pad 1, no bias) + BN1 bias + SiLU -----
    # Nine accumulated MXU dots, bf16 operands / f32 accumulation, N = P lanes.
    h = None
    for t, s in enumerate(shifts):
      tap = shifted(x, s).astype(jnp.bfloat16)                    # (Cin, P)
      part = jnp.dot(w_exp_ref[t], tap,
                     preferred_element_type=jnp.float32)          # (Chid, P)
      h = part if h is None else h + part
    h = h + b1_ref[...]
    h = h * jax.nn.sigmoid(h)          # SiLU
    h = h * mask                       # zero the halo -> correct depthwise padding
  else:
    # Module invariant: hidden_dim == in_channels; x already has a zero halo.
    h = x

  # ---- depthwise 3x3 (groups=Chid) + BN2 bias + SiLU (VPU, lane-dense) ----
  d = None
  for t, s in enumerate(shifts):
    term = shifted(h, s) * w_dw_ref[t]                            # (Chid, P)
    d = term if d is None else d + term
  d = d + b2_ref[...]
  d = d * jax.nn.sigmoid(d)
  d = d * mask                         # halo must be zero for the SE mean

  # ---- squeeze-excitation (VPU multiplies + XLU reductions, f32) ----------
  pooled = jnp.sum(d, axis=1, keepdims=True) * (1.0 / HW)         # (Chid, 1)
  t1 = jnp.sum(w_se1_ref[...] * pooled, axis=0, keepdims=True)    # (1, Cr)
  t1 = t1 + b_se1_ref[...]
  t1 = t1 * jax.nn.sigmoid(t1)         # SiLU
  se = jnp.sum(w_se2_ref[...] * t1, axis=1, keepdims=True)        # (Chid, 1)
  se = jax.nn.sigmoid(se + b_se2_ref[...])
  d = d * se                           # per-channel gate, lane broadcast

  # ---- 1x1 projection + BN3 bias, already channel-major / lane-dense ------
  out = jnp.dot(w_pw_ref[...], d.astype(jnp.bfloat16),
                preferred_element_type=jnp.float32)               # (Cout, P)
  out = out + b3_ref[...]
  if use_residual:
    out = out + x                      # eval mode: stochastic_depth == identity
  o_ref[0] = out


def _full_spec(arr):
  nd = arr.ndim

  def idx(n):
    return (0,) * nd

  return pl.BlockSpec(arr.shape, idx)


def inverted_residual_block(x_nchw, p, *, expand, use_residual):
  """NCHW in / NCHW out.  The wrapper only does layout glue (pad, flatten,
  transpose, BN-scale folding); all module compute runs inside the kernel."""
  N, Cin, H, W = x_nchw.shape
  Chid = p['w_dw'].shape[-1]
  Cout = p['w_pw'].shape[-1]
  P = (H + 2) * (W + 2)
  if not expand:
    assert Chid == Cin, "expand=False requires hidden_dim == in_channels"
  if use_residual:
    assert Cout == Cin, "residual connection requires out_channels == in_channels"

  x = x_nchw.astype(jnp.float32)
  # Channel-major, zero-padded, spatially flattened: (N, Cin, (H+2)*(W+2)).
  x_pad = jnp.pad(x, ((0, 0), (0, 0), (1, 1), (1, 1))).reshape(N, Cin, P)

  # 1.0 on interior positions of the padded/flattened spatial axis.
  mask = (jnp.zeros((H + 2, W + 2), jnp.float32)
          .at[1:H + 1, 1:W + 1].set(1.0).reshape(1, P))

  # ---- fold BN scales into conv weights (one-time, host side) -------------
  w_exp_t9 = jnp.transpose(p['w_exp'] * p['bn1_s'][0], (0, 1, 3, 2))
  w_exp_t9 = w_exp_t9.reshape(9, Chid, Cin).astype(jnp.bfloat16)  # (9,Chid,Cin)
  b1 = p['bn1_b'].reshape(Chid, 1)
  w_dw9 = (p['w_dw'] * p['bn2_s'][0]).reshape(9, Chid, 1)
  b2 = p['bn2_b'].reshape(Chid, 1)
  w_se1 = p['w_se1']                                              # (Chid, Cr)
  b_se1 = p['b_se1']                                              # (1, Cr)
  w_se2_t = p['w_se2'].T                                          # (Chid, Cr)
  b_se2 = p['b_se2'].reshape(Chid, 1)
  w_pw_t = (p['w_pw'] * p['bn3_s'][0]).T.astype(jnp.bfloat16)     # (Cout, Chid)
  b3 = p['bn3_b'].reshape(Cout, 1)

  params = (mask, w_exp_t9, b1, w_dw9, b2,
            w_se1, b_se1, w_se2_t, b_se2, w_pw_t, b3)

  kernel = functools.partial(_inverted_residual_kernel, H=H, W=W,
                             expand=expand, use_residual=use_residual)

  out_flat = pl.pallas_call(
      kernel,
      out_shape=jax.ShapeDtypeStruct((N, Cout, P), jnp.float32),
      grid=(N,),
      in_specs=[pl.BlockSpec((1, Cin, P), lambda n: (n, 0, 0))]
               + [_full_spec(a) for a in params],
      out_specs=pl.BlockSpec((1, Cout, P), lambda n: (n, 0, 0)),
      compiler_params=pltpu.CompilerParams(
          dimension_semantics=("parallel",)),
  )(x_pad, *params)

  # Wrapper glue: drop the padding ring, back to NCHW.
  out = out_flat.reshape(N, Cout, H + 2, W + 2)[:, :, 1:H + 1, 1:W + 1]
  return out


def init_params(key, in_channels, out_channels, expand_ratio, reduction):
  hidden = in_channels * expand_ratio
  reduced = int(in_channels / reduction)
  ks = jax.random.split(key, 19)

  def bn_fold(kg, kb, km, kv, c):
    gamma = 1.0 + 0.1 * jax.random.normal(kg, (c,), jnp.float32)
    beta = 0.05 * jax.random.normal(kb, (c,), jnp.float32)
    mean = 0.1 * jax.random.normal(km, (c,), jnp.float32)
    var = jax.random.uniform(kv, (c,), jnp.float32, minval=0.5, maxval=1.5)
    scale = gamma * jax.lax.rsqrt(var + 1e-5)   # eval-mode BN fold
    bias = beta - mean * scale
    return scale.reshape(1, c), bias.reshape(1, c)

  p = {}
  p['w_exp'] = 0.2 * jax.random.normal(ks[0], (3, 3, in_channels, hidden), jnp.float32)
  p['bn1_s'], p['bn1_b'] = bn_fold(ks[1], ks[2], ks[3], ks[4], hidden)
  p['w_dw'] = 0.2 * jax.random.normal(ks[5], (3, 3, hidden), jnp.float32)
  p['bn2_s'], p['bn2_b'] = bn_fold(ks[6], ks[7], ks[8], ks[9], hidden)
  p['w_se1'] = 0.2 * jax.random.normal(ks[10], (hidden, reduced), jnp.float32)
  p['b_se1'] = 0.1 * jax.random.normal(ks[11], (1, reduced), jnp.float32)
  p['w_se2'] = 0.2 * jax.random.normal(ks[12], (reduced, hidden), jnp.float32)
  p['b_se2'] = 0.1 * jax.random.normal(ks[13], (1, hidden), jnp.float32)
  p['w_pw'] = 0.2 * jax.random.normal(ks[14], (hidden, out_channels), jnp.float32)
  p['bn3_s'], p['bn3_b'] = bn_fold(ks[15], ks[16], ks[17], ks[18], out_channels)
  return p


def reference_forward(x_nchw, p, *, expand, use_residual):
  """Pure-JAX reference (lax convs, f32 HIGHEST) for correctness checking."""
  hi = jax.lax.Precision.HIGHEST
  dn = ('NHWC', 'HWIO', 'NHWC')
  x = jnp.transpose(x_nchw, (0, 2, 3, 1)).astype(jnp.float32)
  if expand:
    h = lax.conv_general_dilated(x, p['w_exp'], (1, 1), ((1, 1), (1, 1)),
                                 dimension_numbers=dn, precision=hi)
    h = h * p['bn1_s'][0] + p['bn1_b'][0]
    h = h * jax.nn.sigmoid(h)
  else:
    h = x
  chid = p['w_dw'].shape[-1]
  d = lax.conv_general_dilated(h, p['w_dw'][:, :, None, :], (1, 1),
                               ((1, 1), (1, 1)), dimension_numbers=dn,
                               feature_group_count=chid, precision=hi)
  d = d * p['bn2_s'][0] + p['bn2_b'][0]
  d = d * jax.nn.sigmoid(d)
  pooled = jnp.mean(d, axis=(1, 2))
  s = jnp.matmul(pooled, p['w_se1'], precision=hi) + p['b_se1'][0]
  s = s * jax.nn.sigmoid(s)
  s = jnp.matmul(s, p['w_se2'], precision=hi) + p['b_se2'][0]
  s = jax.nn.sigmoid(s)
  d = d * s[:, None, None, :]
  o = jnp.einsum('nhwc,co->nhwo', d, p['w_pw'], precision=hi)
  o = o * p['bn3_s'][0] + p['bn3_b'][0]
  if use_residual:
    o = o + x
  return jnp.transpose(o, (0, 3, 1, 2))


if __name__ == "__main__":
  # Module config: InvertedResidualBlock(4, 4, kernel_size=3, stride=1,
  #                                      padding=1, expand_ratio=4)
  in_channels, out_channels = 4, 4
  kernel_size, stride, padding = 3, 1, 1
  expand_ratio, reduction = 4, 4
  hidden = in_channels * expand_ratio
  expand = in_channels != hidden                                 # True
  use_residual = (in_channels == out_channels) and stride == 1   # True

  key = jax.random.PRNGKey(0)
  kx, kp = jax.random.split(key)
  N, H, W = 2, 16, 16
  x = jax.random.normal(kx, (N, in_channels, H, W), jnp.float32)   # NCHW

  params = init_params(kp, in_channels, out_channels, expand_ratio, reduction)

  out = jax.block_until_ready(
      inverted_residual_block(x, params, expand=expand, use_residual=use_residual))
  ref = jax.block_until_ready(
      reference_forward(x, params, expand=expand, use_residual=use_residual))

  assert out.shape == (N, out_channels, H, W), out.shape
  # Tolerance accounts for bf16 MXU operands (single pass, f32 accumulation)
  # vs the f32 Precision.HIGHEST reference.
  assert jnp.allclose(out, ref, atol=5e-2, rtol=5e-2), \
      float(jnp.max(jnp.abs(out - ref)))
  print("KERNEL_OK")
</pallas_src>

<mosaic_0001>
module attributes {stable_mosaic.version = 11 : i64} {
  func.func @_inverted_residual_kernel(%arg0: i32, %arg1: memref<1x4x324xf32, #tpu.memory_space<vmem>>, %arg2: memref<1x324xf32, #tpu.memory_space<vmem>>, %arg3: memref<9x16x4xbf16, #tpu.memory_space<vmem>>, %arg4: memref<16x1xf32, #tpu.memory_space<vmem>>, %arg5: memref<9x16x1xf32, #tpu.memory_space<vmem>>, %arg6: memref<16x1xf32, #tpu.memory_space<vmem>>, %arg7: memref<16x1xf32, #tpu.memory_space<vmem>>, %arg8: memref<1x1xf32, #tpu.memory_space<vmem>>, %arg9: memref<16x1xf32, #tpu.memory_space<vmem>>, %arg10: memref<16x1xf32, #tpu.memory_space<vmem>>, %arg11: memref<4x16xbf16, #tpu.memory_space<vmem>>, %arg12: memref<4x1xf32, #tpu.memory_space<vmem>>, %arg13: memref<1x4x324xf32, #tpu.memory_space<vmem>>) attributes {dimension_semantics = [#tpu.dimension_semantics<parallel>], iteration_bounds = array<i64: 2>, scalar_prefetch = 0 : i64, scratch_operands = 0 : i64, tpu.core_type = #tpu.core_type<tc>, window_params = [{transform_indices = @transform_0, window_bounds = array<i64: 1, 4, 324>}, {pipeline_mode = #tpu.pipeline_mode<synchronous>, transform_indices = @transform_1, window_bounds = array<i64: 1, 324>}, {pipeline_mode = #tpu.pipeline_mode<synchronous>, transform_indices = @transform_2, window_bounds = array<i64: 9, 16, 4>}, {pipeline_mode = #tpu.pipeline_mode<synchronous>, transform_indices = @transform_3, window_bounds = array<i64: 16, 1>}, {pipeline_mode = #tpu.pipeline_mode<synchronous>, transform_indices = @transform_4, window_bounds = array<i64: 9, 16, 1>}, {pipeline_mode = #tpu.pipeline_mode<synchronous>, transform_indices = @transform_5, window_bounds = array<i64: 16, 1>}, {pipeline_mode = #tpu.pipeline_mode<synchronous>, transform_indices = @transform_6, window_bounds = array<i64: 16, 1>}, {pipeline_mode = #tpu.pipeline_mode<synchronous>, transform_indices = @transform_7, window_bounds = array<i64: 1, 1>}, {pipeline_mode = #tpu.pipeline_mode<synchronous>, transform_indices = @transform_8, window_bounds = array<i64: 16, 1>}, {pipeline_mode = #tpu.pipeline_mode<synchronous>, transform_indices = @transform_9, window_bounds = array<i64: 16, 1>}, {pipeline_mode = #tpu.pipeline_mode<synchronous>, transform_indices = @transform_10, window_bounds = array<i64: 4, 16>}, {pipeline_mode = #tpu.pipeline_mode<synchronous>, transform_indices = @transform_11, window_bounds = array<i64: 4, 1>}, {transform_indices = @transform_12, window_bounds = array<i64: 1, 4, 324>}]} {
    %c0 = arith.constant 0 : index
    %c0_0 = arith.constant 0 : index
    %c0_1 = arith.constant 0 : index
    %0 = vector.load %arg1[%c0, %c0_0, %c0_1] : memref<1x4x324xf32, #tpu.memory_space<vmem>>, vector<1x4x324xf32>
    %1 = vector.shape_cast %0 : vector<1x4x324xf32> to vector<4x324xf32>
    %c0_2 = arith.constant 0 : index
    %c0_3 = arith.constant 0 : index
    %2 = vector.load %arg2[%c0_2, %c0_3] : memref<1x324xf32, #tpu.memory_space<vmem>>, vector<1x324xf32>
    %cst = arith.constant 0.000000e+00 : f32
    %3 = vector.broadcast %cst : f32 to vector<4x19xf32>
    %4 = vector.extract_strided_slice %1 {offsets = [0, 0], sizes = [4, 305], strides = [1, 1]} : vector<4x324xf32> to vector<4x305xf32>
    %5 = tpu.concatenate %3, %4 in 1 : vector<4x19xf32>, vector<4x305xf32> -> vector<4x324xf32>
    %6 = arith.truncf %5 : vector<4x324xf32> to vector<4x324xbf16>
    %c0_4 = arith.constant 0 : index
    %c0_5 = arith.constant 0 : index
    %c0_6 = arith.constant 0 : index
    %7 = vector.load %arg3[%c0_4, %c0_5, %c0_6] : memref<9x16x4xbf16, #tpu.memory_space<vmem>>, vector<1x16x4xbf16>
    %8 = vector.shape_cast %7 : vector<1x16x4xbf16> to vector<16x4xbf16>
    %cst_7 = arith.constant dense<0.000000e+00> : vector<16x324xf32>
    %9 = tpu.matmul %8, %6, %cst_7 {dimension_numbers = #tpu.dot_dimension_numbers<[1], [0], [0], [1], [0, 0, 1, 1], [], []>} : vector<16x4xbf16>, vector<4x324xbf16>, vector<16x324xf32> -> vector<16x324xf32>
    %cst_8 = arith.constant 0.000000e+00 : f32
    %10 = vector.broadcast %cst_8 : f32 to vector<4x18xf32>
    %11 = vector.extract_strided_slice %1 {offsets = [0, 0], sizes = [4, 306], strides = [1, 1]} : vector<4x324xf32> to vector<4x306xf32>
    %12 = tpu.concatenate %10, %11 in 1 : vector<4x18xf32>, vector<4x306xf32> -> vector<4x324xf32>
    %13 = arith.truncf %12 : vector<4x324xf32> to vector<4x324xbf16>
    %c1 = arith.constant 1 : index
    %c0_9 = arith.constant 0 : index
    %c0_10 = arith.constant 0 : index
    %14 = vector.load %arg3[%c1, %c0_9, %c0_10] : memref<9x16x4xbf16, #tpu.memory_space<vmem>>, vector<1x16x4xbf16>
    %15 = vector.shape_cast %14 : vector<1x16x4xbf16> to vector<16x4xbf16>
    %cst_11 = arith.constant dense<0.000000e+00> : vector<16x324xf32>
    %16 = tpu.matmul %15, %13, %cst_11 {dimension_numbers = #tpu.dot_dimension_numbers<[1], [0], [0], [1], [0, 0, 1, 1], [], []>} : vector<16x4xbf16>, vector<4x324xbf16>, vector<16x324xf32> -> vector<16x324xf32>
    %17 = arith.addf %9, %16 : vector<16x324xf32>
    %cst_12 = arith.constant 0.000000e+00 : f32
    %18 = vector.broadcast %cst_12 : f32 to vector<4x17xf32>
    %19 = vector.extract_strided_slice %1 {offsets = [0, 0], sizes = [4, 307], strides = [1, 1]} : vector<4x324xf32> to vector<4x307xf32>
    %20 = tpu.concatenate %18, %19 in 1 : vector<4x17xf32>, vector<4x307xf32> -> vector<4x324xf32>
    %21 = arith.truncf %20 : vector<4x324xf32> to vector<4x324xbf16>
    %c2 = arith.constant 2 : index
    %c0_13 = arith.constant 0 : index
    %c0_14 = arith.constant 0 : index
    %22 = vector.load %arg3[%c2, %c0_13, %c0_14] : memref<9x16x4xbf16, #tpu.memory_space<vmem>>, vector<1x16x4xbf16>
    %23 = vector.shape_cast %22 : vector<1x16x4xbf16> to vector<16x4xbf16>
    %cst_15 = arith.constant dense<0.000000e+00> : vector<16x324xf32>
    %24 = tpu.matmul %23, %21, %cst_15 {dimension_numbers = #tpu.dot_dimension_numbers<[1], [0], [0], [1], [0, 0, 1, 1], [], []>} : vector<16x4xbf16>, vector<4x324xbf16>, vector<16x324xf32> -> vector<16x324xf32>
    %25 = arith.addf %17, %24 : vector<16x324xf32>
    %cst_16 = arith.constant 0.000000e+00 : f32
    %26 = vector.broadcast %cst_16 : f32 to vector<4x1xf32>
    %27 = vector.extract_strided_slice %1 {offsets = [0, 0], sizes = [4, 323], strides = [1, 1]} : vector<4x324xf32> to vector<4x323xf32>
    %28 = tpu.concatenate %26, %27 in 1 : vector<4x1xf32>, vector<4x323xf32> -> vector<4x324xf32>
    %29 = arith.truncf %28 : vector<4x324xf32> to vector<4x324xbf16>
    %c3 = arith.constant 3 : index
    %c0_17 = arith.constant 0 : index
    %c0_18 = arith.constant 0 : index
    %30 = vector.load %arg3[%c3, %c0_17, %c0_18] : memref<9x16x4xbf16, #tpu.memory_space<vmem>>, vector<1x16x4xbf16>
    %31 = vector.shape_cast %30 : vector<1x16x4xbf16> to vector<16x4xbf16>
    %cst_19 = arith.constant dense<0.000000e+00> : vector<16x324xf32>
    %32 = tpu.matmul %31, %29, %cst_19 {dimension_numbers = #tpu.dot_dimension_numbers<[1], [0], [0], [1], [0, 0, 1, 1], [], []>} : vector<16x4xbf16>, vector<4x324xbf16>, vector<16x324xf32> -> vector<16x324xf32>
    %33 = arith.addf %25, %32 : vector<16x324xf32>
    %34 = arith.truncf %1 : vector<4x324xf32> to vector<4x324xbf16>
    %c4 = arith.constant 4 : index
    %c0_20 = arith.constant 0 : index
    %c0_21 = arith.constant 0 : index
    %35 = vector.load %arg3[%c4, %c0_20, %c0_21] : memref<9x16x4xbf16, #tpu.memory_space<vmem>>, vector<1x16x4xbf16>
    %36 = vector.shape_cast %35 : vector<1x16x4xbf16> to vector<16x4xbf16>
    %cst_22 = arith.constant dense<0.000000e+00> : vector<16x324xf32>
    %37 = tpu.matmul %36, %34, %cst_22 {dimension_numbers = #tpu.dot_dimension_numbers<[1], [0], [0], [1], [0, 0, 1, 1], [], []>} : vector<16x4xbf16>, vector<4x324xbf16>, vector<16x324xf32> -> vector<16x324xf32>
    %38 = arith.addf %33, %37 : vector<16x324xf32>
    %39 = vector.extract_strided_slice %1 {offsets = [0, 1], sizes = [4, 323], strides = [1, 1]} : vector<4x324xf32> to vector<4x323xf32>
    %cst_23 = arith.constant 0.000000e+00 : f32
    %40 = vector.broadcast %cst_23 : f32 to vector<4x1xf32>
    %41 = tpu.concatenate %39, %40 in 1 : vector<4x323xf32>, vector<4x1xf32> -> vector<4x324xf32>
    %42 = arith.truncf %41 : vector<4x324xf32> to vector<4x324xbf16>
    %c5 = arith.constant 5 : index
    %c0_24 = arith.constant 0 : index
    %c0_25 = arith.constant 0 : index
    %43 = vector.load %arg3[%c5, %c0_24, %c0_25] : memref<9x16x4xbf16, #tpu.memory_space<vmem>>, vector<1x16x4xbf16>
    %44 = vector.shape_cast %43 : vector<1x16x4xbf16> to vector<16x4xbf16>
    %cst_26 = arith.constant dense<0.000000e+00> : vector<16x324xf32>
    %45 = tpu.matmul %44, %42, %cst_26 {dimension_numbers = #tpu.dot_dimension_numbers<[1], [0], [0], [1], [0, 0, 1, 1], [], []>} : vector<16x4xbf16>, vector<4x324xbf16>, vector<16x324xf32> -> vector<16x324xf32>
    %46 = arith.addf %38, %45 : vector<16x324xf32>
    %47 = vector.extract_strided_slice %1 {offsets = [0, 17], sizes = [4, 307], strides = [1, 1]} : vector<4x324xf32> to vector<4x307xf32>
    %cst_27 = arith.constant 0.000000e+00 : f32
    %48 = vector.broadcast %cst_27 : f32 to vector<4x17xf32>
    %49 = tpu.concatenate %47, %48 in 1 : vector<4x307xf32>, vector<4x17xf32> -> vector<4x324xf32>
    %50 = arith.truncf %49 : vector<4x324xf32> to vector<4x324xbf16>
    %c6 = arith.constant 6 : index
    %c0_28 = arith.constant 0 : index
    %c0_29 = arith.constant 0 : index
    %51 = vector.load %arg3[%c6, %c0_28, %c0_29] : memref<9x16x4xbf16, #tpu.memory_space<vmem>>, vector<1x16x4xbf16>
    %52 = vector.shape_cast %51 : vector<1x16x4xbf16> to vector<16x4xbf16>
    %cst_30 = arith.constant dense<0.000000e+00> : vector<16x324xf32>
    %53 = tpu.matmul %52, %50, %cst_30 {dimension_numbers = #tpu.dot_dimension_numbers<[1], [0], [0], [1], [0, 0, 1, 1], [], []>} : vector<16x4xbf16>, vector<4x324xbf16>, vector<16x324xf32> -> vector<16x324xf32>
    %54 = arith.addf %46, %53 : vector<16x324xf32>
    %55 = vector.extract_strided_slice %1 {offsets = [0, 18], sizes = [4, 306], strides = [1, 1]} : vector<4x324xf32> to vector<4x306xf32>
    %cst_31 = arith.constant 0.000000e+00 : f32
    %56 = vector.broadcast %cst_31 : f32 to vector<4x18xf32>
    %57 = tpu.concatenate %55, %56 in 1 : vector<4x306xf32>, vector<4x18xf32> -> vector<4x324xf32>
    %58 = arith.truncf %57 : vector<4x324xf32> to vector<4x324xbf16>
    %c7 = arith.constant 7 : index
    %c0_32 = arith.constant 0 : index
    %c0_33 = arith.constant 0 : index
    %59 = vector.load %arg3[%c7, %c0_32, %c0_33] : memref<9x16x4xbf16, #tpu.memory_space<vmem>>, vector<1x16x4xbf16>
    %60 = vector.shape_cast %59 : vector<1x16x4xbf16> to vector<16x4xbf16>
    %cst_34 = arith.constant dense<0.000000e+00> : vector<16x324xf32>
    %61 = tpu.matmul %60, %58, %cst_34 {dimension_numbers = #tpu.dot_dimension_numbers<[1], [0], [0], [1], [0, 0, 1, 1], [], []>} : vector<16x4xbf16>, vector<4x324xbf16>, vector<16x324xf32> -> vector<16x324xf32>
    %62 = arith.addf %54, %61 : vector<16x324xf32>
    %63 = vector.extract_strided_slice %1 {offsets = [0, 19], sizes = [4, 305], strides = [1, 1]} : vector<4x324xf32> to vector<4x305xf32>
    %cst_35 = arith.constant 0.000000e+00 : f32
    %64 = vector.broadcast %cst_35 : f32 to vector<4x19xf32>
    %65 = tpu.concatenate %63, %64 in 1 : vector<4x305xf32>, vector<4x19xf32> -> vector<4x324xf32>
    %66 = arith.truncf %65 : vector<4x324xf32> to vector<4x324xbf16>
    %c8 = arith.constant 8 : index
    %c0_36 = arith.constant 0 : index
    %c0_37 = arith.constant 0 : index
    %67 = vector.load %arg3[%c8, %c0_36, %c0_37] : memref<9x16x4xbf16, #tpu.memory_space<vmem>>, vector<1x16x4xbf16>
    %68 = vector.shape_cast %67 : vector<1x16x4xbf16> to vector<16x4xbf16>
    %cst_38 = arith.constant dense<0.000000e+00> : vector<16x324xf32>
    %69 = tpu.matmul %68, %66, %cst_38 {dimension_numbers = #tpu.dot_dimension_numbers<[1], [0], [0], [1], [0, 0, 1, 1], [], []>} : vector<16x4xbf16>, vector<4x324xbf16>, vector<16x324xf32> -> vector<16x324xf32>
    %70 = arith.addf %62, %69 : vector<16x324xf32>
    %c0_39 = arith.constant 0 : index
    %c0_40 = arith.constant 0 : index
    %71 = vector.load %arg4[%c0_39, %c0_40] : memref<16x1xf32, #tpu.memory_space<vmem>>, vector<16x1xf32>
    %72 = vector.broadcast %71 : vector<16x1xf32> to vector<16x324xf32>
    %73 = arith.addf %70, %72 : vector<16x324xf32>
    %74 = arith.negf %73 : vector<16x324xf32>
    %75 = math.exp %74 : vector<16x324xf32>
    %cst_41 = arith.constant 1.000000e+00 : f32
    %76 = vector.broadcast %cst_41 : f32 to vector<16x324xf32>
    %77 = arith.addf %76, %75 : vector<16x324xf32>
    %78 = arith.divf %76, %77 : vector<16x324xf32>
    %79 = arith.mulf %73, %78 : vector<16x324xf32>
    %80 = vector.broadcast %2 : vector<1x324xf32> to vector<16x324xf32>
    %81 = arith.mulf %79, %80 : vector<16x324xf32>
    %cst_42 = arith.constant 0.000000e+00 : f32
    %82 = vector.broadcast %cst_42 : f32 to vector<16x19xf32>
    %83 = vector.extract_strided_slice %81 {offsets = [0, 0], sizes = [16, 305], strides = [1, 1]} : vector<16x324xf32> to vector<16x305xf32>
    %84 = tpu.concatenate %82, %83 in 1 : vector<16x19xf32>, vector<16x305xf32> -> vector<16x324xf32>
    %c0_43 = arith.constant 0 : index
    %c0_44 = arith.constant 0 : index
    %c0_45 = arith.constant 0 : index
    %85 = vector.load %arg5[%c0_43, %c0_44, %c0_45] : memref<9x16x1xf32, #tpu.memory_space<vmem>>, vector<1x16x1xf32>
    %86 = vector.shape_cast %85 : vector<1x16x1xf32> to vector<16x1xf32>
    %87 = vector.broadcast %86 : vector<16x1xf32> to vector<16x324xf32>
    %88 = arith.mulf %84, %87 : vector<16x324xf32>
    %cst_46 = arith.constant 0.000000e+00 : f32
    %89 = vector.broadcast %cst_46 : f32 to vector<16x18xf32>
    %90 = vector.extract_strided_slice %81 {offsets = [0, 0], sizes = [16, 306], strides = [1, 1]} : vector<16x324xf32> to vector<16x306xf32>
    %91 = tpu.concatenate %89, %90 in 1 : vector<16x18xf32>, vector<16x306xf32> -> vector<16x324xf32>
    %c1_47 = arith.constant 1 : index
    %c0_48 = arith.constant 0 : index
    %c0_49 = arith.constant 0 : index
    %92 = vector.load %arg5[%c1_47, %c0_48, %c0_49] : memref<9x16x1xf32, #tpu.memory_space<vmem>>, vector<1x16x1xf32>
    %93 = vector.shape_cast %92 : vector<1x16x1xf32> to vector<16x1xf32>
    %94 = vector.broadcast %93 : vector<16x1xf32> to vector<16x324xf32>
    %95 = arith.mulf %91, %94 : vector<16x324xf32>
    %96 = arith.addf %88, %95 : vector<16x324xf32>
    %cst_50 = arith.constant 0.000000e+00 : f32
    %97 = vector.broadcast %cst_50 : f32 to vector<16x17xf32>
    %98 = vector.extract_strided_slice %81 {offsets = [0, 0], sizes = [16, 307], strides = [1, 1]} : vector<16x324xf32> to vector<16x307xf32>
    %99 = tpu.concatenate %97, %98 in 1 : vector<16x17xf32>, vector<16x307xf32> -> vector<16x324xf32>
    %c2_51 = arith.constant 2 : index
    %c0_52 = arith.constant 0 : index
    %c0_53 = arith.constant 0 : index
    %100 = vector.load %arg5[%c2_51, %c0_52, %c0_53] : memref<9x16x1xf32, #tpu.memory_space<vmem>>, vector<1x16x1xf32>
    %101 = vector.shape_cast %100 : vector<1x16x1xf32> to vector<16x1xf32>
    %102 = vector.broadcast %101 : vector<16x1xf32> to vector<16x324xf32>
    %103 = arith.mulf %99, %102 : vector<16x324xf32>
    %104 = arith.addf %96, %103 : vector<16x324xf32>
    %cst_54 = arith.constant 0.000000e+00 : f32
    %105 = vector.broadcast %cst_54 : f32 to vector<16x1xf32>
    %106 = vector.extract_strided_slice %81 {offsets = [0, 0], sizes = [16, 323], strides = [1, 1]} : vector<16x324xf32> to vector<16x323xf32>
    %107 = tpu.concatenate %105, %106 in 1 : vector<16x1xf32>, vector<16x323xf32> -> vector<16x324xf32>
    %c3_55 = arith.constant 3 : index
    %c0_56 = arith.constant 0 : index
    %c0_57 = arith.constant 0 : index
    %108 = vector.load %arg5[%c3_55, %c0_56, %c0_57] : memref<9x16x1xf32, #tpu.memory_space<vmem>>, vector<1x16x1xf32>
    %109 = vector.shape_cast %108 : vector<1x16x1xf32> to vector<16x1xf32>
    %110 = vector.broadcast %109 : vector<16x1xf32> to vector<16x324xf32>
    %111 = arith.mulf %107, %110 : vector<16x324xf32>
    %112 = arith.addf %104, %111 : vector<16x324xf32>
    %c4_58 = arith.constant 4 : index
    %c0_59 = arith.constant 0 : index
    %c0_60 = arith.constant 0 : index
    %113 = vector.load %arg5[%c4_58, %c0_59, %c0_60] : memref<9x16x1xf32, #tpu.memory_space<vmem>>, vector<1x16x1xf32>
    %114 = vector.shape_cast %113 : vector<1x16x1xf32> to vector<16x1xf32>
    %115 = vector.broadcast %114 : vector<16x1xf32> to vector<16x324xf32>
    %116 = arith.mulf %81, %115 : vector<16x324xf32>
    %117 = arith.addf %112, %116 : vector<16x324xf32>
    %118 = vector.extract_strided_slice %81 {offsets = [0, 1], sizes = [16, 323], strides = [1, 1]} : vector<16x324xf32> to vector<16x323xf32>
    %cst_61 = arith.constant 0.000000e+00 : f32
    %119 = vector.broadcast %cst_61 : f32 to vector<16x1xf32>
    %120 = tpu.concatenate %118, %119 in 1 : vector<16x323xf32>, vector<16x1xf32> -> vector<16x324xf32>
    %c5_62 = arith.constant 5 : index
    %c0_63 = arith.constant 0 : index
    %c0_64 = arith.constant 0 : index
    %121 = vector.load %arg5[%c5_62, %c0_63, %c0_64] : memref<9x16x1xf32, #tpu.memory_space<vmem>>, vector<1x16x1xf32>
    %122 = vector.shape_cast %121 : vector<1x16x1xf32> to vector<16x1xf32>
    %123 = vector.broadcast %122 : vector<16x1xf32> to vector<16x324xf32>
    %124 = arith.mulf %120, %123 : vector<16x324xf32>
    %125 = arith.addf %117, %124 : vector<16x324xf32>
    %126 = vector.extract_strided_slice %81 {offsets = [0, 17], sizes = [16, 307], strides = [1, 1]} : vector<16x324xf32> to vector<16x307xf32>
    %cst_65 = arith.constant 0.000000e+00 : f32
    %127 = vector.broadcast %cst_65 : f32 to vector<16x17xf32>
    %128 = tpu.concatenate %126, %127 in 1 : vector<16x307xf32>, vector<16x17xf32> -> vector<16x324xf32>
    %c6_66 = arith.constant 6 : index
    %c0_67 = arith.constant 0 : index
    %c0_68 = arith.constant 0 : index
    %129 = vector.load %arg5[%c6_66, %c0_67, %c0_68] : memref<9x16x1xf32, #tpu.memory_space<vmem>>, vector<1x16x1xf32>
    %130 = vector.shape_cast %129 : vector<1x16x1xf32> to vector<16x1xf32>
    %131 = vector.broadcast %130 : vector<16x1xf32> to vector<16x324xf32>
    %132 = arith.mulf %128, %131 : vector<16x324xf32>
    %133 = arith.addf %125, %132 : vector<16x324xf32>
    %134 = vector.extract_strided_slice %81 {offsets = [0, 18], sizes = [16, 306], strides = [1, 1]} : vector<16x324xf32> to vector<16x306xf32>
    %cst_69 = arith.constant 0.000000e+00 : f32
    %135 = vector.broadcast %cst_69 : f32 to vector<16x18xf32>
    %136 = tpu.concatenate %134, %135 in 1 : vector<16x306xf32>, vector<16x18xf32> -> vector<16x324xf32>
    %c7_70 = arith.constant 7 : index
    %c0_71 = arith.constant 0 : index
    %c0_72 = arith.constant 0 : index
    %137 = vector.load %arg5[%c7_70, %c0_71, %c0_72] : memref<9x16x1xf32, #tpu.memory_space<vmem>>, vector<1x16x1xf32>
    %138 = vector.shape_cast %137 : vector<1x16x1xf32> to vector<16x1xf32>
    %139 = vector.broadcast %138 : vector<16x1xf32> to vector<16x324xf32>
    %140 = arith.mulf %136, %139 : vector<16x324xf32>
    %141 = arith.addf %133, %140 : vector<16x324xf32>
    %142 = vector.extract_strided_slice %81 {offsets = [0, 19], sizes = [16, 305], strides = [1, 1]} : vector<16x324xf32> to vector<16x305xf32>
    %cst_73 = arith.constant 0.000000e+00 : f32
    %143 = vector.broadcast %cst_73 : f32 to vector<16x19xf32>
    %144 = tpu.concatenate %142, %143 in 1 : vector<16x305xf32>, vector<16x19xf32> -> vector<16x324xf32>
    %c8_74 = arith.constant 8 : index
    %c0_75 = arith.constant 0 : index
    %c0_76 = arith.constant 0 : index
    %145 = vector.load %arg5[%c8_74, %c0_75, %c0_76] : memref<9x16x1xf32, #tpu.memory_space<vmem>>, vector<1x16x1xf32>
    %146 = vector.shape_cast %145 : vector<1x16x1xf32> to vector<16x1xf32>
    %147 = vector.broadcast %146 : vector<16x1xf32> to vector<16x324xf32>
    %148 = arith.mulf %144, %147 : vector<16x324xf32>
    %149 = arith.addf %141, %148 : vector<16x324xf32>
    %c0_77 = arith.constant 0 : index
    %c0_78 = arith.constant 0 : index
    %150 = vector.load %arg6[%c0_77, %c0_78] : memref<16x1xf32, #tpu.memory_space<vmem>>, vector<16x1xf32>
    %151 = vector.broadcast %150 : vector<16x1xf32> to vector<16x324xf32>
    %152 = arith.addf %149, %151 : vector<16x324xf32>
    %153 = arith.negf %152 : vector<16x324xf32>
    %154 = math.exp %153 : vector<16x324xf32>
    %cst_79 = arith.constant 1.000000e+00 : f32
    %155 = vector.broadcast %cst_79 : f32 to vector<16x324xf32>
    %156 = arith.addf %155, %154 : vector<16x324xf32>
    %157 = arith.divf %155, %156 : vector<16x324xf32>
    %158 = arith.mulf %152, %157 : vector<16x324xf32>
    %159 = vector.broadcast %2 : vector<1x324xf32> to vector<16x324xf32>
    %160 = arith.mulf %158, %159 : vector<16x324xf32>
    %cst_80 = arith.constant dense<0.000000e+00> : vector<16xf32>
    %161 = vector.multi_reduction <add>, %160, %cst_80 [1] : vector<16x324xf32> to vector<16xf32>
    %162 = vector.shape_cast %161 : vector<16xf32> to vector<16x1xf32>
    %cst_81 = arith.constant 3.906250e-03 : f32
    %163 = vector.broadcast %cst_81 : f32 to vector<16x1xf32>
    %164 = arith.mulf %162, %163 : vector<16x1xf32>
    %c0_82 = arith.constant 0 : index
    %c0_83 = arith.constant 0 : index
    %165 = vector.load %arg7[%c0_82, %c0_83] : memref<16x1xf32, #tpu.memory_space<vmem>>, vector<16x1xf32>
    %166 = arith.mulf %165, %164 : vector<16x1xf32>
    %cst_84 = arith.constant dense<0.000000e+00> : vector<1xf32>
    %167 = vector.multi_reduction <add>, %166, %cst_84 [0] : vector<16x1xf32> to vector<1xf32>
    %168 = vector.shape_cast %167 : vector<1xf32> to vector<1x1xf32>
    %c0_85 = arith.constant 0 : index
    %c0_86 = arith.constant 0 : index
    %169 = vector.load %arg8[%c0_85, %c0_86] : memref<1x1xf32, #tpu.memory_space<vmem>>, vector<1x1xf32>
    %170 = arith.addf %168, %169 : vector<1x1xf32>
    %171 = arith.negf %170 : vector<1x1xf32>
    %172 = math.exp %171 : vector<1x1xf32>
    %cst_87 = arith.constant 1.000000e+00 : f32
    %173 = vector.broadcast %cst_87 : f32 to vector<1x1xf32>
    %174 = arith.addf %173, %172 : vector<1x1xf32>
    %175 = arith.divf %173, %174 : vector<1x1xf32>
    %176 = arith.mulf %170, %175 : vector<1x1xf32>
    %c0_88 = arith.constant 0 : index
    %c0_89 = arith.constant 0 : index
    %177 = vector.load %arg9[%c0_88, %c0_89] : memref<16x1xf32, #tpu.memory_space<vmem>>, vector<16x1xf32>
    %178 = vector.broadcast %176 : vector<1x1xf32> to vector<16x1xf32>
    %179 = arith.mulf %177, %178 : vector<16x1xf32>
    %cst_90 = arith.constant dense<0.000000e+00> : vector<16xf32>
    %180 = vector.multi_reduction <add>, %179, %cst_90 [1] : vector<16x1xf32> to vector<16xf32>
    %181 = vector.shape_cast %180 : vector<16xf32> to vector<16x1xf32>
    %c0_91 = arith.constant 0 : index
    %c0_92 = arith.constant 0 : index
    %182 = vector.load %arg10[%c0_91, %c0_92] : memref<16x1xf32, #tpu.memory_space<vmem>>, vector<16x1xf32>
    %183 = arith.addf %181, %182 : vector<16x1xf32>
    %184 = arith.negf %183 : vector<16x1xf32>
    %185 = math.exp %184 : vector<16x1xf32>
    %cst_93 = arith.constant 1.000000e+00 : f32
    %186 = vector.broadcast %cst_93 : f32 to vector<16x1xf32>
    %187 = arith.addf %186, %185 : vector<16x1xf32>
    %188 = arith.divf %186, %187 : vector<16x1xf32>
    %189 = vector.broadcast %188 : vector<16x1xf32> to vector<16x324xf32>
    %190 = arith.mulf %160, %189 : vector<16x324xf32>
    %c0_94 = arith.constant 0 : index
    %c0_95 = arith.constant 0 : index
    %191 = vector.load %arg11[%c0_94, %c0_95] : memref<4x16xbf16, #tpu.memory_space<vmem>>, vector<4x16xbf16>
    %192 = arith.truncf %190 : vector<16x324xf32> to vector<16x324xbf16>
    %cst_96 = arith.constant dense<0.000000e+00> : vector<4x324xf32>
    %193 = tpu.matmul %191, %192, %cst_96 {dimension_numbers = #tpu.dot_dimension_numbers<[1], [0], [0], [1], [0, 0, 1, 1], [], []>} : vector<4x16xbf16>, vector<16x324xbf16>, vector<4x324xf32> -> vector<4x324xf32>
    %c0_97 = arith.constant 0 : index
    %c0_98 = arith.constant 0 : index
    %194 = vector.load %arg12[%c0_97, %c0_98] : memref<4x1xf32, #tpu.memory_space<vmem>>, vector<4x1xf32>
    %195 = vector.broadcast %194 : vector<4x1xf32> to vector<4x324xf32>
    %196 = arith.addf %193, %195 : vector<4x324xf32>
    %197 = arith.addf %196, %1 : vector<4x324xf32>
    %c0_99 = arith.constant 0 : index
    %c0_100 = arith.constant 0 : index
    %c0_101 = arith.constant 0 : index
    %198 = vector.load %arg13[%c0_99, %c0_100, %c0_101] : memref<1x4x324xf32, #tpu.memory_space<vmem>>, vector<1x4x324xf32>
    %199 = vector.shape_cast %198 : vector<1x4x324xf32> to vector<4x324xf32>
    %200 = vector.shape_cast %197 : vector<4x324xf32> to vector<1x4x324xf32>
    tpu.vector_store %arg13[%c0_99, %c0_100, %c0_101], %200 {strides = array<i32>} : memref<1x4x324xf32, #tpu.memory_space<vmem>>, vector<1x4x324xf32>,
    return
  }
  func.func @transform_0(%arg0: i32) -> (i32, i32, i32) {
    %c0_i32 = arith.constant 0 : i32
    %c0_i32_0 = arith.constant 0 : i32
    %c0_i32_1 = arith.constant 0 : i32
    return %arg0, %c0_i32, %c0_i32_0 : i32, i32, i32
  }
  func.func @transform_1(%arg0: i32) -> (i32, i32) {
    %c0_i32 = arith.constant 0 : i32
    %c0_i32_0 = arith.constant 0 : i32
    %c0_i32_1 = arith.constant 0 : i32
    return %c0_i32, %c0_i32_0 : i32, i32
  }
  func.func @transform_2(%arg0: i32) -> (i32, i32, i32) {
    %c0_i32 = arith.constant 0 : i32
    %c0_i32_0 = arith.constant 0 : i32
    %c0_i32_1 = arith.constant 0 : i32
    %c0_i32_2 = arith.constant 0 : i32
    return %c0_i32, %c0_i32_0, %c0_i32_1 : i32, i32, i32
  }
  func.func @transform_3(%arg0: i32) -> (i32, i32) {
    %c0_i32 = arith.constant 0 : i32
    %c0_i32_0 = arith.constant 0 : i32
    %c0_i32_1 = arith.constant 0 : i32
    return %c0_i32, %c0_i32_0 : i32, i32
  }
  func.func @transform_4(%arg0: i32) -> (i32, i32, i32) {
    %c0_i32 = arith.constant 0 : i32
    %c0_i32_0 = arith.constant 0 : i32
    %c0_i32_1 = arith.constant 0 : i32
    %c0_i32_2 = arith.constant 0 : i32
    return %c0_i32, %c0_i32_0, %c0_i32_1 : i32, i32, i32
  }
  func.func @transform_5(%arg0: i32) -> (i32, i32) {
    %c0_i32 = arith.constant 0 : i32
    %c0_i32_0 = arith.constant 0 : i32
    %c0_i32_1 = arith.constant 0 : i32
    return %c0_i32, %c0_i32_0 : i32, i32
  }
  func.func @transform_6(%arg0: i32) -> (i32, i32) {
    %c0_i32 = arith.constant 0 : i32
    %c0_i32_0 = arith.constant 0 : i32
    %c0_i32_1 = arith.constant 0 : i32
    return %c0_i32, %c0_i32_0 : i32, i32
  }
  func.func @transform_7(%arg0: i32) -> (i32, i32) {
    %c0_i32 = arith.constant 0 : i32
    %c0_i32_0 = arith.constant 0 : i32
    %c0_i32_1 = arith.constant 0 : i32
    return %c0_i32, %c0_i32_0 : i32, i32
  }
  func.func @transform_8(%arg0: i32) -> (i32, i32) {
    %c0_i32 = arith.constant 0 : i32
    %c0_i32_0 = arith.constant 0 : i32
    %c0_i32_1 = arith.constant 0 : i32
    return %c0_i32, %c0_i32_0 : i32, i32
  }
  func.func @transform_9(%arg0: i32) -> (i32, i32) {
    %c0_i32 = arith.constant 0 : i32
    %c0_i32_0 = arith.constant 0 : i32
    %c0_i32_1 = arith.constant 0 : i32
    return %c0_i32, %c0_i32_0 : i32, i32
  }
  func.func @transform_10(%arg0: i32) -> (i32, i32) {
    %c0_i32 = arith.constant 0 : i32
    %c0_i32_0 = arith.constant 0 : i32
    %c0_i32_1 = arith.constant 0 : i32
    return %c0_i32, %c0_i32_0 : i32, i32
  }
  func.func @transform_11(%arg0: i32) -> (i32, i32) {
    %c0_i32 = arith.constant 0 : i32
    %c0_i32_0 = arith.constant 0 : i32
    %c0_i32_1 = arith.constant 0 : i32
    return %c0_i32, %c0_i32_0 : i32, i32
  }
  func.func @transform_12(%arg0: i32) -> (i32, i32, i32) {
    %c0_i32 = arith.constant 0 : i32
    %c0_i32_0 = arith.constant 0 : i32
    %c0_i32_1 = arith.constant 0 : i32
    return %arg0, %c0_i32, %c0_i32_0 : i32, i32, i32
  }
}

</mosaic_0001>

<llo_original>
// kernel: tpu_custom_call.1
$region0: #{tpu_custom_call.1}
  #allocation0 [shape = 'u32[]', space=smem, size = 0x4, offset = 0x4, fixed_abs, tag = 'smem constant byte address 0x4 - core index']
  #allocation1 [shape = 'u32[144,128]{1,0:T(1,128)}', space=vmem, size = 0x12000, scoped, tag = 'internal scratch']
  #allocation2 [shape = 'f32[1,1]{1,0:T(1,128)S(1)}', space=vmem, size = 0x200, scoped, tag = 'scoped memory for tpu_custom_call.1']
  %s0 = inlined_call_operand.vmem [shape: f32[2,4,324], index: 0, kind: input, shape index: {}]
  %s1 = inlined_call_operand.vmem [shape: f32[1,324], index: 1, kind: input, shape index: {}]
  %s2 = inlined_call_operand.vmem [shape: bf16[9,16,4], index: 2, kind: input, shape index: {}]
  %s3 = inlined_call_operand.vmem [shape: f32[16,1], index: 3, kind: input, shape index: {}]
  %s4 = inlined_call_operand.vmem [shape: f32[9,16,1], index: 4, kind: input, shape index: {}]
  %s5 = inlined_call_operand.vmem [shape: f32[16,1], index: 5, kind: input, shape index: {}]
  %s6 = inlined_call_operand.vmem [shape: f32[16,1], index: 6, kind: input, shape index: {}]
  %s7 = inlined_call_operand.<no memory space> [shape: f32[1,1], index: 7, kind: input, shape index: {}]
  %s8 = inlined_call_operand.vmem [shape: f32[16,1], index: 8, kind: input, shape index: {}]
  %s9 = inlined_call_operand.vmem [shape: f32[16,1], index: 9, kind: input, shape index: {}]
  %s10 = inlined_call_operand.vmem [shape: bf16[4,16], index: 10, kind: input, shape index: {}]
  %s11 = inlined_call_operand.vmem [shape: f32[4,1], index: 11, kind: input, shape index: {}]
  %s12 = inlined_call_operand.hbm [shape: f32[2,4,324], index: 12, kind: output, shape index: {}]
  %s13 = sld [smem:[#allocation0]]
  $region81: #{tpu_custom_call.1} parent=0
    _
  %s15 = ssub.s32 1, %s13
  %s16 = scalar_select 0, %s15, %s13
  %v17 = vstv %s7
  %18 = vst [vmem:[#allocation2] sm:$0x1] %v17
  $region1: #{tpu_custom_call.1} parent=0
    #allocation3 [shape = 'u8[12288]{0}', space=vmem, size = 0x3000, scoped, tag = 'output window, operand 0']
    #allocation4 [shape = 's32[2]{0}', space=sflag, size = 0x8, scoped, tag = 'scoped memory for tpu_custom_call.1']
    %19 = vsyncpa [#allocation4], 0
    %s20 = scalar_lea.sflag [#allocation4], 1
    %21 = vsyncpa %s20, 0
    loop: start=0, step=1, limit=4
    $region2: #{tpu_custom_call.1} parent=1 // loop_pre_header
      _
    $region3: #{tpu_custom_call.1} parent=1 // loop_header
      %s23 = sphi 0, %s27
      %p24 = scmp.ge.s32.totalorder %s23, 4
      %s33 = sphi 0, %s35
      %s36 = sphi 0, %s33
      %s37 = sphi 0, %s36
      %s53 = sphi 0, %s37
      %s57 = sphi 0, %s57
      %s59 = sphi 0, %s57
      %s60 = sphi 0, %s59
      %s74 = sphi 0, %s60
      %s78 = sphi 0, %s78
      %s80 = sphi 0, %s78
      %s81 = sphi 0, %s80
      %s95 = sphi 0, %s81
      %s99 = sphi 0, %s99
      %s101 = sphi 0, %s99
      %s102 = sphi 0, %s101
      %s116 = sphi 0, %s102
      %s120 = sphi 0, %s120
      %s122 = sphi 0, %s120
      %s123 = sphi 0, %s122
      %s137 = sphi 0, %s123
      %s141 = sphi 0, %s141
      %s143 = sphi 0, %s141
      %s144 = sphi 0, %s143
      %s158 = sphi 0, %s144
      %s162 = sphi 0, %s162
      %s164 = sphi 0, %s162
      %s165 = sphi 0, %s164
      %s179 = sphi 0, %s165
      %s183 = sphi 0, %s183
      %s185 = sphi 0, %s183
      %s186 = sphi 0, %s185
      %s200 = sphi 0, %s186
      %s204 = sphi 0, %s204
      %s206 = sphi 0, %s204
      %s207 = sphi 0, %s206
      %s221 = sphi 0, %s207
      %s225 = sphi 0, %s225
      %s227 = sphi 0, %s225
      %s228 = sphi 0, %s227
      %s242 = sphi 0, %s228
      %s246 = sphi 0, %s246
      %s248 = sphi 0, %s246
      %s249 = sphi 0, %s248
      %s263 = sphi 0, %s249
      %s267 = sphi 0, %s267
      %s269 = sphi 0, %s267
      %s270 = sphi 0, %s269
      %s284 = sphi 0, %s270
      %s290 = sphi 0, %s292
      %s293 = sphi 0, %s290
      %s294 = sphi 0, %s293
      %s310 = sphi 0, %s294
    $region4: #{tpu_custom_call.1} parent=1 // loop_header_branch
      %26 = sbr.rel (%p24) target = $region8
    $region5: #{tpu_custom_call.1} parent=1 // loop_body
      %s28 = ssub.s32 %s23, 1
      %s29 = ssub.s32 %s23, 2
      %s30 = sadd.s32 %s23, 1
      %s31 = ssub.s32 %s23, %s30
      %p32 = scmp.eq.s32.totalorder %s31, 0
      %s34 = sadd.s32 %s33, 1
      %s35 = scalar_select %p32, %s33, %s34
      %p38 = pneg %p32
      %p39 = scmp.eq.s32.totalorder %s23, 1
      %p40 = por %p38, %p39
      %p41 = scmp.ne.s32.totalorder %s33, %s36
      %p42 = scmp.eq.s32.totalorder %s23, 0
      %p43 = por %p41, %p42
      %p44 = scmp.ne.s32.totalorder %s33, %s36
      %p45 = scmp.eq.s32.totalorder %s28, 1
      %p46 = por %p44, %p45
      %p47 = scmp.ne.s32.totalorder %s36, %s37
      %p48 = scmp.eq.s32.totalorder %s28, 0
      %p49 = por %p47, %p48
      %p50 = scmp.ne.s32.totalorder %s36, %s37
      %p51 = scmp.eq.s32.totalorder %s29, 1
      %p52 = por %p50, %p51
      %p54 = scmp.ne.s32.totalorder %s37, %s53
      %p55 = scmp.eq.s32.totalorder %s29, 0
      %p56 = por %p54, %p55
      %s58 = sadd.s32 %s57, 1
      %p61 = scmp.eq.s32.totalorder %s23, 1
      %p62 = scmp.ne.s32.totalorder %s57, %s59
      %p63 = scmp.eq.s32.totalorder %s23, 0
      %p64 = por %p62, %p63
      %p65 = scmp.ne.s32.totalorder %s57, %s59
      %p66 = scmp.eq.s32.totalorder %s28, 1
      %p67 = por %p65, %p66
      %p68 = scmp.ne.s32.totalorder %s59, %s60
      %p69 = scmp.eq.s32.totalorder %s28, 0
      %p70 = por %p68, %p69
      %p71 = scmp.ne.s32.totalorder %s59, %s60
      %p72 = scmp.eq.s32.totalorder %s29, 1
      %p73 = por %p71, %p72
      %p75 = scmp.ne.s32.totalorder %s60, %s74
      %p76 = scmp.eq.s32.totalorder %s29, 0
      %p77 = por %p75, %p76
      %s79 = sadd.s32 %s78, 1
      %p82 = scmp.eq.s32.totalorder %s23, 1
      %p83 = scmp.ne.s32.totalorder %s78, %s80
      %p84 = scmp.eq.s32.totalorder %s23, 0
      %p85 = por %p83, %p84
      %p86 = scmp.ne.s32.totalorder %s78, %s80
      %p87 = scmp.eq.s32.totalorder %s28, 1
      %p88 = por %p86, %p87
      %p89 = scmp.ne.s32.totalorder %s80, %s81
      %p90 = scmp.eq.s32.totalorder %s28, 0
      %p91 = por %p89, %p90
      %p92 = scmp.ne.s32.totalorder %s80, %s81
      %p93 = scmp.eq.s32.totalorder %s29, 1
      %p94 = por %p92, %p93
      %p96 = scmp.ne.s32.totalorder %s81, %s95
      %p97 = scmp.eq.s32.totalorder %s29, 0
      %p98 = por %p96, %p97
      %s100 = sadd.s32 %s99, 1
      %p103 = scmp.eq.s32.totalorder %s23, 1
      %p104 = scmp.ne.s32.totalorder %s99, %s101
      %p105 = scmp.eq.s32.totalorder %s23, 0
      %p106 = por %p104, %p105
      %p107 = scmp.ne.s32.totalorder %s99, %s101
      %p108 = scmp.eq.s32.totalorder %s28, 1
      %p109 = por %p107, %p108
      %p110 = scmp.ne.s32.totalorder %s101, %s102
      %p111 = scmp.eq.s32.totalorder %s28, 0
      %p112 = por %p110, %p111
      %p113 = scmp.ne.s32.totalorder %s101, %s102
      %p114 = scmp.eq.s32.totalorder %s29, 1
      %p115 = por %p113, %p114
      %p117 = scmp.ne.s32.totalorder %s102, %s116
      %p118 = scmp.eq.s32.totalorder %s29, 0
      %p119 = por %p117, %p118
      %s121 = sadd.s32 %s120, 1
      %p124 = scmp.eq.s32.totalorder %s23, 1
      %p125 = scmp.ne.s32.totalorder %s120, %s122
      %p126 = scmp.eq.s32.totalorder %s23, 0
      %p127 = por %p125, %p126
      %p128 = scmp.ne.s32.totalorder %s120, %s122
      %p129 = scmp.eq.s32.totalorder %s28, 1
      %p130 = por %p128, %p129
      %p131 = scmp.ne.s32.totalorder %s122, %s123
      %p132 = scmp.eq.s32.totalorder %s28, 0
      %p133 = por %p131, %p132
      %p134 = scmp.ne.s32.totalorder %s122, %s123
      %p135 = scmp.eq.s32.totalorder %s29, 1
      %p136 = por %p134, %p135
      %p138 = scmp.ne.s32.totalorder %s123, %s137
      %p139 = scmp.eq.s32.totalorder %s29, 0
      %p140 = por %p138, %p139
      %s142 = sadd.s32 %s141, 1
      %p145 = scmp.eq.s32.totalorder %s23, 1
      %p146 = scmp.ne.s32.totalorder %s141, %s143
      %p147 = scmp.eq.s32.totalorder %s23, 0
      %p148 = por %p146, %p147
      %p149 = scmp.ne.s32.totalorder %s141, %s143
      %p150 = scmp.eq.s32.totalorder %s28, 1
      %p151 = por %p149, %p150
      %p152 = scmp.ne.s32.totalorder %s143, %s144
      %p153 = scmp.eq.s32.totalorder %s28, 0
      %p154 = por %p152, %p153
      %p155 = scmp.ne.s32.totalorder %s143, %s144
      %p156 = scmp.eq.s32.totalorder %s29, 1
      %p157 = por %p155, %p156
      %p159 = scmp.ne.s32.totalorder %s144, %s158
      %p160 = scmp.eq.s32.totalorder %s29, 0
      %p161 = por %p159, %p160
      %s163 = sadd.s32 %s162, 1
      %p166 = scmp.eq.s32.totalorder %s23, 1
      %p167 = scmp.ne.s32.totalorder %s162, %s164
      %p168 = scmp.eq.s32.totalorder %s23, 0
      %p169 = por %p167, %p168
      %p170 = scmp.ne.s32.totalorder %s162, %s164
      %p171 = scmp.eq.s32.totalorder %s28, 1
      %p172 = por %p170, %p171
      %p173 = scmp.ne.s32.totalorder %s164, %s165
      %p174 = scmp.eq.s32.totalorder %s28, 0
      %p175 = por %p173, %p174
      %p176 = scmp.ne.s32.totalorder %s164, %s165
      %p177 = scmp.eq.s32.totalorder %s29, 1
      %p178 = por %p176, %p177
      %p180 = scmp.ne.s32.totalorder %s165, %s179
      %p181 = scmp.eq.s32.totalorder %s29, 0
      %p182 = por %p180, %p181
      %s184 = sadd.s32 %s183, 1
      %p187 = scmp.eq.s32.totalorder %s23, 1
      %p188 = scmp.ne.s32.totalorder %s183, %s185
      %p189 = scmp.eq.s32.totalorder %s23, 0
      %p190 = por %p188, %p189
      %p191 = scmp.ne.s32.totalorder %s183, %s185
      %p192 = scmp.eq.s32.totalorder %s28, 1
      %p193 = por %p191, %p192
      %p194 = scmp.ne.s32.totalorder %s185, %s186
      %p195 = scmp.eq.s32.totalorder %s28, 0
      %p196 = por %p194, %p195
      %p197 = scmp.ne.s32.totalorder %s185, %s186
      %p198 = scmp.eq.s32.totalorder %s29, 1
      %p199 = por %p197, %p198
      %p201 = scmp.ne.s32.totalorder %s186, %s200
      %p202 = scmp.eq.s32.totalorder %s29, 0
      %p203 = por %p201, %p202
      %s205 = sadd.s32 %s204, 1
      %p208 = scmp.eq.s32.totalorder %s23, 1
      %p209 = scmp.ne.s32.totalorder %s204, %s206
      %p210 = scmp.eq.s32.totalorder %s23, 0
      %p211 = por %p209, %p210
      %p212 = scmp.ne.s32.totalorder %s204, %s206
      %p213 = scmp.eq.s32.totalorder %s28, 1
      %p214 = por %p212, %p213
      %p215 = scmp.ne.s32.totalorder %s206, %s207
      %p216 = scmp.eq.s32.totalorder %s28, 0
      %p217 = por %p215, %p216
      %p218 = scmp.ne.s32.totalorder %s206, %s207
      %p219 = scmp.eq.s32.totalorder %s29, 1
      %p220 = por %p218, %p219
      %p222 = scmp.ne.s32.totalorder %s207, %s221
      %p223 = scmp.eq.s32.totalorder %s29, 0
      %p224 = por %p222, %p223
      %s226 = sadd.s32 %s225, 1
      %p229 = scmp.eq.s32.totalorder %s23, 1
      %p230 = scmp.ne.s32.totalorder %s225, %s227
      %p231 = scmp.eq.s32.totalorder %s23, 0
      %p232 = por %p230, %p231
      %p233 = scmp.ne.s32.totalorder %s225, %s227
      %p234 = scmp.eq.s32.totalorder %s28, 1
      %p235 = por %p233, %p234
      %p236 = scmp.ne.s32.totalorder %s227, %s228
      %p237 = scmp.eq.s32.totalorder %s28, 0
      %p238 = por %p236, %p237
      %p239 = scmp.ne.s32.totalorder %s227, %s228
      %p240 = scmp.eq.s32.totalorder %s29, 1
      %p241 = por %p239, %p240
      %p243 = scmp.ne.s32.totalorder %s228, %s242
      %p244 = scmp.eq.s32.totalorder %s29, 0
      %p245 = por %p243, %p244
      %s247 = sadd.s32 %s246, 1
      %p250 = scmp.eq.s32.totalorder %s23, 1
      %p251 = scmp.ne.s32.totalorder %s246, %s248
      %p252 = scmp.eq.s32.totalorder %s23, 0
      %p253 = por %p251, %p252
      %p254 = scmp.ne.s32.totalorder %s246, %s248
      %p255 = scmp.eq.s32.totalorder %s28, 1
      %p256 = por %p254, %p255
      %p257 = scmp.ne.s32.totalorder %s248, %s249
      %p258 = scmp.eq.s32.totalorder %s28, 0
      %p259 = por %p257, %p258
      %p260 = scmp.ne.s32.totalorder %s248, %s249
      %p261 = scmp.eq.s32.totalorder %s29, 1
      %p262 = por %p260, %p261
      %p264 = scmp.ne.s32.totalorder %s249, %s263
      %p265 = scmp.eq.s32.totalorder %s29, 0
      %p266 = por %p264, %p265
      %s268 = sadd.s32 %s267, 1
      %p271 = scmp.eq.s32.totalorder %s23, 1
      %p272 = scmp.ne.s32.totalorder %s267, %s269
      %p273 = scmp.eq.s32.totalorder %s23, 0
      %p274 = por %p272, %p273
      %p275 = scmp.ne.s32.totalorder %s267, %s269
      %p276 = scmp.eq.s32.totalorder %s28, 1
      %p277 = por %p275, %p276
      %p278 = scmp.ne.s32.totalorder %s269, %s270
      %p279 = scmp.eq.s32.totalorder %s28, 0
      %p280 = por %p278, %p279
      %p281 = scmp.ne.s32.totalorder %s269, %s270
      %p282 = scmp.eq.s32.totalorder %s29, 1
      %p283 = por %p281, %p282
      %p285 = scmp.ne.s32.totalorder %s270, %s284
      %p286 = scmp.eq.s32.totalorder %s29, 0
      %p287 = por %p285, %p286
      %s288 = ssub.s32 %s23, %s30
      %p289 = scmp.eq.s32.totalorder %s288, 0
      %s291 = sadd.s32 %s290, 1
      %s292 = scalar_select %p289, %s290, %s291
      %p295 = pneg %p289
      %p296 = scmp.eq.s32.totalorder %s23, 1
      %p297 = por %p295, %p296
      %p298 = scmp.ne.s32.totalorder %s290, %s293
      %p299 = scmp.eq.s32.totalorder %s23, 0
      %p300 = por %p298, %p299
      %p301 = scmp.ne.s32.totalorder %s290, %s293
      %p302 = scmp.eq.s32.totalorder %s28, 1
      %p303 = por %p301, %p302
      %p304 = scmp.ne.s32.totalorder %s293, %s294
      %p305 = scmp.eq.s32.totalorder %s28, 0
      %p306 = por %p304, %p305
      %p307 = scmp.ne.s32.totalorder %s293, %s294
      %p308 = scmp.eq.s32.totalorder %s29, 1
      %p309 = por %p307, %p308
      %p311 = scmp.ne.s32.totalorder %s294, %s310
      %p312 = scmp.eq.s32.totalorder %s29, 0
      %p313 = por %p311, %p312
      %p314 = scmp.le.s32.totalorder 1, %s23
      %p315 = scmp.lt.s32.totalorder %s23, 3
      %p316 = pnand %p314, %p315
      %p317 = pneg %p316
      // Predicated region
      $region9: #{tpu_custom_call.1} parent=5 // pred_check
        _
      $region10: #{tpu_custom_call.1} parent=5 // pred_check_branch
        %319 = sbr.rel (%p316) target = $region12
      $region11: #{tpu_custom_call.1} parent=5 // pred_region
        %s320 = ssub.s32 %s23, 1
        // Predicated region
        $region13: #{tpu_custom_call.1} parent=11 // pred_check
          %p321 = pneg %p70
        $region14: #{tpu_custom_call.1} parent=11 // pred_check_branch
          %323 = sbr.rel (%p321) target = $region16
        $region15: #{tpu_custom_call.1} parent=11 // pred_region
          _
        $region16: #{tpu_custom_call.1} parent=11 // pred_fallthru
          _
        // Predicated region
        $region17: #{tpu_custom_call.1} parent=11 // pred_check
          %p324 = pneg %p91
        $region18: #{tpu_custom_call.1} parent=11 // pred_check_branch
          %326 = sbr.rel (%p324) target = $region20
        $region19: #{tpu_custom_call.1} parent=11 // pred_region
          _
        $region20: #{tpu_custom_call.1} parent=11 // pred_fallthru
          _
        // Predicated region
        $region21: #{tpu_custom_call.1} parent=11 // pred_check
          %p327 = pneg %p112
        $region22: #{tpu_custom_call.1} parent=11 // pred_check_branch
          %329 = sbr.rel (%p327) target = $region24
        $region23: #{tpu_custom_call.1} parent=11 // pred_region
          _
        $region24: #{tpu_custom_call.1} parent=11 // pred_fallthru
          _
        // Predicated region
        $region25: #{tpu_custom_call.1} parent=11 // pred_check
          %p330 = pneg %p133
        $region26: #{tpu_custom_call.1} parent=11 // pred_check_branch
          %332 = sbr.rel (%p330) target = $region28
        $region27: #{tpu_custom_call.1} parent=11 // pred_region
          _
        $region28: #{tpu_custom_call.1} parent=11 // pred_fallthru
          _
        // Predicated region
        $region29: #{tpu_custom_call.1} parent=11 // pred_check
          %p333 = pneg %p154
        $region30: #{tpu_custom_call.1} parent=11 // pred_check_branch
          %335 = sbr.rel (%p333) target = $region32
        $region31: #{tpu_custom_call.1} parent=11 // pred_region
          _
        $region32: #{tpu_custom_call.1} parent=11 // pred_fallthru
          _
        // Predicated region
        $region33: #{tpu_custom_call.1} parent=11 // pred_check
          %p336 = pneg %p175
        $region34: #{tpu_custom_call.1} parent=11 // pred_check_branch
          %338 = sbr.rel (%p336) target = $region36
        $region35: #{tpu_custom_call.1} parent=11 // pred_region
          _
        $region36: #{tpu_custom_call.1} parent=11 // pred_fallthru
          _
        // Predicated region
        $region37: #{tpu_custom_call.1} parent=11 // pred_check
          %p339 = pneg %p196
        $region38: #{tpu_custom_call.1} parent=11 // pred_check_branch
          %341 = sbr.rel (%p339) target = $region40
        $region39: #{tpu_custom_call.1} parent=11 // pred_region
          _
        $region40: #{tpu_custom_call.1} parent=11 // pred_fallthru
          _
        // Predicated region
        $region41: #{tpu_custom_call.1} parent=11 // pred_check
          %p342 = pneg %p217
        $region42: #{tpu_custom_call.1} parent=11 // pred_check_branch
          %344 = sbr.rel (%p342) target = $region44
        $region43: #{tpu_custom_call.1} parent=11 // pred_region
          _
        $region44: #{tpu_custom_call.1} parent=11 // pred_fallthru
          _
        // Predicated region
        $region45: #{tpu_custom_call.1} parent=11 // pred_check
          %p345 = pneg %p238
        $region46: #{tpu_custom_call.1} parent=11 // pred_check_branch
          %347 = sbr.rel (%p345) target = $region48
        $region47: #{tpu_custom_call.1} parent=11 // pred_region
          _
        $region48: #{tpu_custom_call.1} parent=11 // pred_fallthru
          _
        // Predicated region
        $region49: #{tpu_custom_call.1} parent=11 // pred_check
          %p348 = pneg %p259
        $region50: #{tpu_custom_call.1} parent=11 // pred_check_branch
          %350 = sbr.rel (%p348) target = $region52
        $region51: #{tpu_custom_call.1} parent=11 // pred_region
          _
        $region52: #{tpu_custom_call.1} parent=11 // pred_fallthru
          _
        // Predicated region
        $region53: #{tpu_custom_call.1} parent=11 // pred_check
          %p351 = pneg %p280
        $region54: #{tpu_custom_call.1} parent=11 // pred_check_branch
          %353 = sbr.rel (%p351) target = $region56
        $region55: #{tpu_custom_call.1} parent=11 // pred_region
          _
        $region56: #{tpu_custom_call.1} parent=11 // pred_fallthru
          _
      $region12: #{tpu_custom_call.1} parent=5 // pred_fallthru
        _
      %p354 = scmp.lt.s32.totalorder %s23, 2
      // Predicated region
      $region57: #{tpu_custom_call.1} parent=5 // pred_check
        %p355 = pneg %p354
      $region58: #{tpu_custom_call.1} parent=5 // pred_check_branch
        %357 = sbr.rel (%p355) target = $region60
      $region59: #{tpu_custom_call.1} parent=5 // pred_region
        // Predicated region
        $region61: #{tpu_custom_call.1} parent=59 // pred_check
          %p358 = pneg %p43
        $region62: #{tpu_custom_call.1} parent=59 // pred_check_branch
          %360 = sbr.rel (%p358) target = $region64
        $region63: #{tpu_custom_call.1} parent=59 // pred_region
          %p361 = scmp.lt.s32.totalorder %s23, 1
          %s362 = scalar_select %p361, %s23, 1
          %s363 = smul.addr %s362, 3
          %s364 = smul.addr %s363, 4
          %s365 = scalar_lea.vmem %s0, %s364
        $region64: #{tpu_custom_call.1} parent=59 // pred_fallthru
          _
      $region60: #{tpu_custom_call.1} parent=5 // pred_fallthru
        _
      %p366 = scmp.le.s32.totalorder 1, %s23
      %p367 = scmp.lt.s32.totalorder %s23, 3
      %p368 = pnand %p366, %p367
      %p369 = pneg %p368
      // Predicated region
      $region65: #{tpu_custom_call.1} parent=5 // pred_check
        _
      $region66: #{tpu_custom_call.1} parent=5 // pred_check_branch
        %371 = sbr.rel (%p368) target = $region68
      $region67: #{tpu_custom_call.1} parent=5 // pred_region
        %s372 = ssub.s32 %s23, 1
        %p373 = scmp.lt.s32.totalorder %s28, 1
        %s374 = scalar_select %p373, %s28, 1
        %s375 = smul.addr %s374, 3
        %s376 = smul.addr %s375, 4
        %s377 = scalar_lea.vmem %s0, %s376
        %p378 = pneg %p49
        %p379 = pneg %p46
        %p380 = pneg %p70
        %p381 = pneg %p67
        %p382 = pneg %p91
        %p383 = pneg %p88
        %p384 = pneg %p112
        %p385 = pneg %p109
        %p386 = pneg %p133
        %p387 = pneg %p130
        %p388 = pneg %p154
        %p389 = pneg %p151
        %p390 = pneg %p175
        %p391 = pneg %p172
        %p392 = pneg %p196
        %p393 = pneg %p193
        %p394 = pneg %p217
        %p395 = pneg %p214
        %p396 = pneg %p238
        %p397 = pneg %p235
        %p398 = pneg %p259
        %p399 = pneg %p256
        %p400 = pneg %p280
        %p401 = pneg %p277
        %p402 = pneg %p306
        %p403 = pneg %p303
        %s404 = sand.u32 %s293, 1
        %s405 = scalar_lea.sflag [#allocation4], %s404
        %s406 = sand.u32 %s293, 1
        %s407 = smul.addr %s406, 12
        %s408 = scalar_lea.vmem [#allocation3], %s407
        %p409 = scmp.lt.s32.totalorder %s28, 1
        %s410 = scalar_select %p409, %s28, 1
        %s411 = smul.addr %s410, 3
        %s412 = smul.addr %s411, 4
        %s413 = scalar_lea.vmem %s0, %s412
        %v415 = vld [vmem:[%s413] sm:$0xff]
        %v416 = vld [vmem:[%s413 + $0x8] sm:$0xf]
        %v417 = vld [vmem:[%s1] sm:$0x7]
        %v420 = vcombine.high %v415, %v415
        %421 = vrot.lane.b32.xlu0 %v415, 19
        %v422 = vpop.permute.xlu0 %421
        %423 = vrot.lane.b32.xlu0 %v420, 19
        %v424 = vpop.permute.xlu0 %423
        %425 = vrot.lane.b32.xlu0 %v416, 19
        %v426 = vpop.permute.xlu0 %425
        %vm427 = vcmask 154624
        %v428 = vsel %vm427, %v422, %v424
        %v429 = vsel %vm427, %v424, %v426
        %v433 = vsel %vm427, 0.0, %v422
        %v434 = vpack.c.bf16 %v433, %v433
        %v435 = vpack.c.bf16 %v428, %v428
        %v436 = vpack.c.bf16 %v429, %v429
        %v437 = vld [vmem:[%s2] sm:$0xf]
        %v438 = vld [vmem:[%s2 + $0x4] sm:$0xf]
        %439 = vrot.lane.b32.xlu0 %v415, 18
        %v440 = vpop.permute.xlu0 %439
        %441 = vrot.lane.b32.xlu0 %v420, 18
        %v442 = vpop.permute.xlu0 %441
        %443 = vrot.lane.b32.xlu0 %v416, 18
        %v444 = vpop.permute.xlu0 %443
        %vm445 = vcmask 146432
        %v446 = vsel %vm445, %v440, %v442
        %v447 = vsel %vm445, %v442, %v444
        %v451 = vsel %vm445, 0.0, %v440
        %v452 = vpack.c.bf16 %v451, %v451
        %v453 = vpack.c.bf16 %v446, %v446
        %v454 = vpack.c.bf16 %v447, %v447
        %s455 = scalar_lea.vmem %s2, 8
        %v456 = vld [vmem:[%s455] sm:$0xf]
        %v457 = vld [vmem:[%s455 + $0x4] sm:$0xf]
        %v460 = vunpack.c.l.b16 %v456
        %v461 = vunpack.c.l.b16 %v457
        %v462 = vpack.c.b16 %v461, %v460
        %vm463 = vcmask 31744
        %v465 = vsel %vm463, %v462, 0
        %vm467 = vcmask 1041408
        %v469 = vsel %vm467, %v452, 0
        %v472 = vsel %vm467, %v453, 0
        %v475 = vsel %vm467, %v454, 0
        %477 = vmatprep.subr.bf16.mxu0 0
        %478 = vmatpush1.bf16.msra.mxu0 0
        %479 = vmatprep.subr.bf16.mxu0 0
        %480 = vmatpush1.bf16.msra.mxu0 0
        %481 = vmatprep.subr.bf16.mxu0 0
        %482 = vmatpush1.bf16.msra.mxu0 0
        %483 = vmatprep.subr.bf16.mxu0 0
        %484 = vmatpush1.bf16.msra.mxu0 0
        %485 = vmatprep.subr.bf16.mxu0 0
        %486 = vmatpush1.bf16.msra.mxu0 0
        %487 = vmatprep.subr.bf16.mxu0 0
        %488 = vmatpush1.bf16.msra.mxu0 0
        %489 = vmatprep.subr.bf16.mxu0 0
        %490 = vmatpush1.bf16.msra.mxu0 0
        %491 = vmatprep.subr.bf16.mxu0 %v472
        %492 = vmatpush1.bf16.msra.mxu0 %v469
        %493 = vmatprep.subr.bf16.mxu0 0
        %494 = vmatpush2.bf16.msra.mxu0 0
        %495 = vmatprep.subr.bf16.mxu0 0
        %496 = vmatpush2.bf16.msra.mxu0 0
        %497 = vmatprep.subr.bf16.mxu0 0
        %498 = vmatpush2.bf16.msra.mxu0 0
        %499 = vmatprep.subr.bf16.mxu0 0
        %500 = vmatpush2.bf16.msra.mxu0 0
        %501 = vmatprep.subr.bf16.mxu0 0
        %502 = vmatpush2.bf16.msra.mxu0 0
        %503 = vmatprep.subr.bf16.mxu0 0
        %504 = vmatpush2.bf16.msra.mxu0 0
        %505 = vmatprep.subr.bf16.mxu0 0
        %506 = vmatpush2.bf16.msra.mxu0 0
        %507 = vmatprep.subr.bf16.mxu0 0
        %508 = vmatpush2.bf16.msra.mxu0 0
        %509 = vmatprep.mubr.bf16.mxu0 0
        %510 = vmatmul.mubr.bf16.gmra.mxu0 %v465
        %v511 = vpop.f32.mrf.mxu0
        %v512 = vadd.f32 0.0, %v511
        %v513 = vpop.f32.mrf.mxu0
        %v514 = vadd.f32 0.0, %v513
        %v515 = vpop.f32.mrf.mxu0
        %v516 = vadd.f32 0.0, %v515
        %v517 = vpop.f32.mrf.mxu0
        %v518 = vadd.f32 0.0, %v517
        %519 = vdwg.mxu0
        %520 = vmatprep.subr.bf16.mxu0 0
        %521 = vmatpush1.bf16.msra.mxu0 0
        %522 = vmatprep.subr.bf16.mxu0 0
        %523 = vmatpush1.bf16.msra.mxu0 0
        %524 = vmatprep.subr.bf16.mxu0 0
        %525 = vmatpush1.bf16.msra.mxu0 0
        %526 = vmatprep.subr.bf16.mxu0 0
        %527 = vmatpush1.bf16.msra.mxu0 0
        %528 = vmatprep.subr.bf16.mxu0 0
        %529 = vmatpush1.bf16.msra.mxu0 0
        %530 = vmatprep.subr.bf16.mxu0 0
        %531 = vmatpush1.bf16.msra.mxu0 0
        %532 = vmatprep.subr.bf16.mxu0 0
        %533 = vmatpush1.bf16.msra.mxu0 0
        %534 = vmatprep.subr.bf16.mxu0 0
        %535 = vmatpush1.bf16.msra.mxu0 %v475
        %536 = vmatprep.subr.bf16.mxu0 0
        %537 = vmatpush2.bf16.msra.mxu0 0
        %538 = vmatprep.subr.bf16.mxu0 0
        %539 = vmatpush2.bf16.msra.mxu0 0
        %540 = vmatprep.subr.bf16.mxu0 0
        %541 = vmatpush2.bf16.msra.mxu0 0
        %542 = vmatprep.subr.bf16.mxu0 0
        %543 = vmatpush2.bf16.msra.mxu0 0
        %544 = vmatprep.subr.bf16.mxu0 0
        %545 = vmatpush2.bf16.msra.mxu0 0
        %546 = vmatprep.subr.bf16.mxu0 0
        %547 = vmatpush2.bf16.msra.mxu0 0
        %548 = vmatprep.subr.bf16.mxu0 0
        %549 = vmatpush2.bf16.msra.mxu0 0
        %550 = vmatprep.subr.bf16.mxu0 0
        %551 = vmatpush2.bf16.msra.mxu0 0
        %552 = vmatprep.mubr.bf16.mxu0 0
        %553 = vmatmul.mubr.bf16.gmra.mxu0 %v465
        %v554 = vpop.f32.mrf.mxu0
        %v555 = vadd.f32 0.0, %v554
        %v556 = vpop.f32.mrf.mxu0
        %v557 = vpop.f32.mrf.mxu0
        %v558 = vadd.f32 0.0, %v557
        %v559 = vpop.f32.mrf.mxu0
        %560 = vdwg.mxu0
        %v563 = vunpack.c.l.b16 %v437
        %v564 = vunpack.c.l.b16 %v438
        %v565 = vpack.c.b16 %v564, %v563
        %v567 = vsel %vm463, %v565, 0
        %v570 = vsel %vm467, %v434, 0
        %v573 = vsel %vm467, %v435, 0
        %v576 = vsel %vm467, %v436, 0
        %578 = vmatprep.subr.bf16.mxu0 0
        %579 = vmatpush1.bf16.msra.mxu0 0
        %580 = vmatprep.subr.bf16.mxu0 0
        %581 = vmatpush1.bf16.msra.mxu0 0
        %582 = vmatprep.subr.bf16.mxu0 0
        %583 = vmatpush1.bf16.msra.mxu0 0
        %584 = vmatprep.subr.bf16.mxu0 0
        %585 = vmatpush1.bf16.msra.mxu0 0
        %586 = vmatprep.subr.bf16.mxu0 0
        %587 = vmatpush1.bf16.msra.mxu0 0
        %588 = vmatprep.subr.bf16.mxu0 0
        %589 = vmatpush1.bf16.msra.mxu0 0
        %590 = vmatprep.subr.bf16.mxu0 0
        %591 = vmatpush1.bf16.msra.mxu0 0
        %592 = vmatprep.subr.bf16.mxu0 %v573
        %593 = vmatpush1.bf16.msra.mxu0 %v570
        %594 = vmatprep.subr.bf16.mxu0 0
        %595 = vmatpush2.bf16.msra.mxu0 0
        %596 = vmatprep.subr.bf16.mxu0 0
        %597 = vmatpush2.bf16.msra.mxu0 0
        %598 = vmatprep.subr.bf16.mxu0 0
        %599 = vmatpush2.bf16.msra.mxu0 0
        %600 = vmatprep.subr.bf16.mxu0 0
        %601 = vmatpush2.bf16.msra.mxu0 0
        %602 = vmatprep.subr.bf16.mxu0 0
        %603 = vmatpush2.bf16.msra.mxu0 0
        %604 = vmatprep.subr.bf16.mxu0 0
        %605 = vmatpush2.bf16.msra.mxu0 0
        %606 = vmatprep.subr.bf16.mxu0 0
        %607 = vmatpush2.bf16.msra.mxu0 0
        %608 = vmatprep.subr.bf16.mxu0 0
        %609 = vmatpush2.bf16.msra.mxu0 0
        %610 = vmatprep.mubr.bf16.mxu0 0
        %611 = vmatmul.mubr.bf16.gmra.mxu0 %v567
        %v612 = vpop.f32.mrf.mxu0
        %v613 = vadd.f32 %v512, %v612
        %v614 = vpop.f32.mrf.mxu0
        %v615 = vadd.f32 %v514, %v614
        %v616 = vpop.f32.mrf.mxu0
        %v617 = vadd.f32 %v516, %v616
        %v618 = vpop.f32.mrf.mxu0
        %v619 = vadd.f32 %v518, %v618
        %620 = vdwg.mxu0
        %621 = vmatprep.subr.bf16.mxu0 0
        %622 = vmatpush1.bf16.msra.mxu0 0
        %623 = vmatprep.subr.bf16.mxu0 0
        %624 = vmatpush1.bf16.msra.mxu0 0
        %625 = vmatprep.subr.bf16.mxu0 0
        %626 = vmatpush1.bf16.msra.mxu0 0
        %627 = vmatprep.subr.bf16.mxu0 0
        %628 = vmatpush1.bf16.msra.mxu0 0
        %629 = vmatprep.subr.bf16.mxu0 0
        %630 = vmatpush1.bf16.msra.mxu0 0
        %631 = vmatprep.subr.bf16.mxu0 0
        %632 = vmatpush1.bf16.msra.mxu0 0
        %633 = vmatprep.subr.bf16.mxu0 0
        %634 = vmatpush1.bf16.msra.mxu0 0
        %635 = vmatprep.subr.bf16.mxu0 0
        %636 = vmatpush1.bf16.msra.mxu0 %v576
        %637 = vmatprep.subr.bf16.mxu0 0
        %638 = vmatpush2.bf16.msra.mxu0 0
        %639 = vmatprep.subr.bf16.mxu0 0
        %640 = vmatpush2.bf16.msra.mxu0 0
        %641 = vmatprep.subr.bf16.mxu0 0
        %642 = vmatpush2.bf16.msra.mxu0 0
        %643 = vmatprep.subr.bf16.mxu0 0
        %644 = vmatpush2.bf16.msra.mxu0 0
        %645 = vmatprep.subr.bf16.mxu0 0
        %646 = vmatpush2.bf16.msra.mxu0 0
        %647 = vmatprep.subr.bf16.mxu0 0
        %648 = vmatpush2.bf16.msra.mxu0 0
        %649 = vmatprep.subr.bf16.mxu0 0
        %650 = vmatpush2.bf16.msra.mxu0 0
        %651 = vmatprep.subr.bf16.mxu0 0
        %652 = vmatpush2.bf16.msra.mxu0 0
        %653 = vmatprep.mubr.bf16.mxu0 0
        %654 = vmatmul.mubr.bf16.gmra.mxu0 %v567
        %v655 = vpop.f32.mrf.mxu0
        %v656 = vadd.f32 %v555, %v655
        %v657 = vpop.f32.mrf.mxu0
        %v658 = vpop.f32.mrf.mxu0
        %v659 = vadd.f32 %v558, %v658
        %v660 = vpop.f32.mrf.mxu0
        %661 = vdwg.mxu0
        %662 = vrot.lane.b32.xlu0 %v415, 17
        %v663 = vpop.permute.xlu0 %662
        %664 = vrot.lane.b32.xlu0 %v420, 17
        %v665 = vpop.permute.xlu0 %664
        %666 = vrot.lane.b32.xlu0 %v416, 17
        %v667 = vpop.permute.xlu0 %666
        %vm668 = vcmask 138240
        %v669 = vsel %vm668, %v663, %v665
        %v670 = vsel %vm668, %v665, %v667
        %v674 = vsel %vm668, 0.0, %v663
        %v675 = vpack.c.bf16 %v674, %v674
        %v676 = vpack.c.bf16 %v669, %v669
        %v677 = vpack.c.bf16 %v670, %v670
        %s678 = scalar_lea.vmem %s2, 16
        %v679 = vld [vmem:[%s678] sm:$0xf]
        %v680 = vld [vmem:[%s678 + $0x4] sm:$0xf]
        %v683 = vunpack.c.l.b16 %v679
        %v684 = vunpack.c.l.b16 %v680
        %v685 = vpack.c.b16 %v684, %v683
        %v687 = vsel %vm463, %v685, 0
        %v690 = vsel %vm467, %v675, 0
        %v693 = vsel %vm467, %v676, 0
        %v696 = vsel %vm467, %v677, 0
        %698 = vmatprep.subr.bf16.mxu0 0
        %699 = vmatpush1.bf16.msra.mxu0 0
        %700 = vmatprep.subr.bf16.mxu0 0
        %701 = vmatpush1.bf16.msra.mxu0 0
        %702 = vmatprep.subr.bf16.mxu0 0
        %703 = vmatpush1.bf16.msra.mxu0 0
        %704 = vmatprep.subr.bf16.mxu0 0
        %705 = vmatpush1.bf16.msra.mxu0 0
        %706 = vmatprep.subr.bf16.mxu0 0
        %707 = vmatpush1.bf16.msra.mxu0 0
        %708 = vmatprep.subr.bf16.mxu0 0
        %709 = vmatpush1.bf16.msra.mxu0 0
        %710 = vmatprep.subr.bf16.mxu0 0
        %711 = vmatpush1.bf16.msra.mxu0 0
        %712 = vmatprep.subr.bf16.mxu0 %v693
        %713 = vmatpush1.bf16.msra.mxu0 %v690
        %714 = vmatprep.subr.bf16.mxu0 0
        %715 = vmatpush2.bf16.msra.mxu0 0
        %716 = vmatprep.subr.bf16.mxu0 0
        %717 = vmatpush2.bf16.msra.mxu0 0
        %718 = vmatprep.subr.bf16.mxu0 0
        %719 = vmatpush2.bf16.msra.mxu0 0
        %720 = vmatprep.subr.bf16.mxu0 0
        %721 = vmatpush2.bf16.msra.mxu0 0
        %722 = vmatprep.subr.bf16.mxu0 0
        %723 = vmatpush2.bf16.msra.mxu0 0
        %724 = vmatprep.subr.bf16.mxu0 0
        %725 = vmatpush2.bf16.msra.mxu0 0
        %726 = vmatprep.subr.bf16.mxu0 0
        %727 = vmatpush2.bf16.msra.mxu0 0
        %728 = vmatprep.subr.bf16.mxu0 0
        %729 = vmatpush2.bf16.msra.mxu0 0
        %730 = vmatprep.mubr.bf16.mxu0 0
        %731 = vmatmul.mubr.bf16.gmra.mxu0 %v687
        %v732 = vpop.f32.mrf.mxu0
        %v733 = vadd.f32 0.0, %v732
        %v734 = vpop.f32.mrf.mxu0
        %v735 = vadd.f32 0.0, %v734
        %v736 = vpop.f32.mrf.mxu0
        %v737 = vadd.f32 0.0, %v736
        %v738 = vpop.f32.mrf.mxu0
        %v739 = vadd.f32 0.0, %v738
        %740 = vdwg.mxu0
        %741 = vmatprep.subr.bf16.mxu0 0
        %742 = vmatpush1.bf16.msra.mxu0 0
        %743 = vmatprep.subr.bf16.mxu0 0
        %744 = vmatpush1.bf16.msra.mxu0 0
        %745 = vmatprep.subr.bf16.mxu0 0
        %746 = vmatpush1.bf16.msra.mxu0 0
        %747 = vmatprep.subr.bf16.mxu0 0
        %748 = vmatpush1.bf16.msra.mxu0 0
        %749 = vmatprep.subr.bf16.mxu0 0
        %750 = vmatpush1.bf16.msra.mxu0 0
        %751 = vmatprep.subr.bf16.mxu0 0
        %752 = vmatpush1.bf16.msra.mxu0 0
        %753 = vmatprep.subr.bf16.mxu0 0
        %754 = vmatpush1.bf16.msra.mxu0 0
        %755 = vmatprep.subr.bf16.mxu0 0
        %756 = vmatpush1.bf16.msra.mxu0 %v696
        %757 = vmatprep.subr.bf16.mxu0 0
        %758 = vmatpush2.bf16.msra.mxu0 0
        %759 = vmatprep.subr.bf16.mxu0 0
        %760 = vmatpush2.bf16.msra.mxu0 0
        %761 = vmatprep.subr.bf16.mxu0 0
        %762 = vmatpush2.bf16.msra.mxu0 0
        %763 = vmatprep.subr.bf16.mxu0 0
        %764 = vmatpush2.bf16.msra.mxu0 0
        %765 = vmatprep.subr.bf16.mxu0 0
        %766 = vmatpush2.bf16.msra.mxu0 0
        %767 = vmatprep.subr.bf16.mxu0 0
        %768 = vmatpush2.bf16.msra.mxu0 0
        %769 = vmatprep.subr.bf16.mxu0 0
        %770 = vmatpush2.bf16.msra.mxu0 0
        %771 = vmatprep.subr.bf16.mxu0 0
        %772 = vmatpush2.bf16.msra.mxu0 0
        %773 = vmatprep.mubr.bf16.mxu0 0
        %774 = vmatmul.mubr.bf16.gmra.mxu0 %v687
        %v775 = vpop.f32.mrf.mxu0
        %v776 = vadd.f32 0.0, %v775
        %v777 = vpop.f32.mrf.mxu0
        %v778 = vpop.f32.mrf.mxu0
        %v779 = vadd.f32 0.0, %v778
        %v780 = vpop.f32.mrf.mxu0
        %781 = vdwg.mxu0
        %v782 = vadd.f32 %v613, %v733
        %v783 = vadd.f32 %v615, %v735
        %v784 = vadd.f32 %v656, %v776
        %v785 = vadd.f32 %v617, %v737
        %v786 = vadd.f32 %v619, %v739
        %v787 = vadd.f32 %v659, %v779
        %788 = vrot.lane.b32.xlu0 %v415, 1
        %v789 = vpop.permute.xlu0 %788
        %790 = vrot.lane.b32.xlu0 %v420, 1
        %v791 = vpop.permute.xlu0 %790
        %792 = vrot.lane.b32.xlu0 %v416, 1
        %v793 = vpop.permute.xlu0 %792
        %vm794 = vcmask 7168
        %v795 = vsel %vm794, %v789, %v791
        %v796 = vsel %vm794, %v791, %v793
        %v800 = vsel %vm794, 0.0, %v789
        %v801 = vpack.c.bf16 %v800, %v800
        %v802 = vpack.c.bf16 %v795, %v795
        %v803 = vpack.c.bf16 %v796, %v796
        %s804 = scalar_lea.vmem %s2, 24
        %v805 = vld [vmem:[%s804] sm:$0xf]
        %v806 = vld [vmem:[%s804 + $0x4] sm:$0xf]
        %v809 = vunpack.c.l.b16 %v805
        %v810 = vunpack.c.l.b16 %v806
        %v811 = vpack.c.b16 %v810, %v809
        %v813 = vsel %vm463, %v811, 0
        %v816 = vsel %vm467, %v801, 0
        %v819 = vsel %vm467, %v802, 0
        %v822 = vsel %vm467, %v803, 0
        %824 = vmatprep.subr.bf16.mxu0 0
        %825 = vmatpush1.bf16.msra.mxu0 0
        %826 = vmatprep.subr.bf16.mxu0 0
        %827 = vmatpush1.bf16.msra.mxu0 0
        %828 = vmatprep.subr.bf16.mxu0 0
        %829 = vmatpush1.bf16.msra.mxu0 0
        %830 = vmatprep.subr.bf16.mxu0 0
        %831 = vmatpush1.bf16.msra.mxu0 0
        %832 = vmatprep.subr.bf16.mxu0 0
        %833 = vmatpush1.bf16.msra.mxu0 0
        %834 = vmatprep.subr.bf16.mxu0 0
        %835 = vmatpush1.bf16.msra.mxu0 0
        %836 = vmatprep.subr.bf16.mxu0 0
        %837 = vmatpush1.bf16.msra.mxu0 0
        %838 = vmatprep.subr.bf16.mxu0 %v819
        %839 = vmatpush1.bf16.msra.mxu0 %v816
        %840 = vmatprep.subr.bf16.mxu0 0
        %841 = vmatpush2.bf16.msra.mxu0 0
        %842 = vmatprep.subr.bf16.mxu0 0
        %843 = vmatpush2.bf16.msra.mxu0 0
        %844 = vmatprep.subr.bf16.mxu0 0
        %845 = vmatpush2.bf16.msra.mxu0 0
        %846 = vmatprep.subr.bf16.mxu0 0
        %847 = vmatpush2.bf16.msra.mxu0 0
        %848 = vmatprep.subr.bf16.mxu0 0
        %849 = vmatpush2.bf16.msra.mxu0 0
        %850 = vmatprep.subr.bf16.mxu0 0
        %851 = vmatpush2.bf16.msra.mxu0 0
        %852 = vmatprep.subr.bf16.mxu0 0
        %853 = vmatpush2.bf16.msra.mxu0 0
        %854 = vmatprep.subr.bf16.mxu0 0
        %855 = vmatpush2.bf16.msra.mxu0 0
        %856 = vmatprep.mubr.bf16.mxu0 0
        %857 = vmatmul.mubr.bf16.gmra.mxu0 %v813
        %v858 = vpop.f32.mrf.mxu0
        %v859 = vadd.f32 0.0, %v858
        %v860 = vpop.f32.mrf.mxu0
        %v861 = vadd.f32 0.0, %v860
        %v862 = vpop.f32.mrf.mxu0
        %v863 = vadd.f32 0.0, %v862
        %v864 = vpop.f32.mrf.mxu0
        %v865 = vadd.f32 0.0, %v864
        %866 = vdwg.mxu0
        %867 = vmatprep.subr.bf16.mxu0 0
        %868 = vmatpush1.bf16.msra.mxu0 0
        %869 = vmatprep.subr.bf16.mxu0 0
        %870 = vmatpush1.bf16.msra.mxu0 0
        %871 = vmatprep.subr.bf16.mxu0 0
        %872 = vmatpush1.bf16.msra.mxu0 0
        %873 = vmatprep.subr.bf16.mxu0 0
        %874 = vmatpush1.bf16.msra.mxu0 0
        %875 = vmatprep.subr.bf16.mxu0 0
        %876 = vmatpush1.bf16.msra.mxu0 0
        %877 = vmatprep.subr.bf16.mxu0 0
        %878 = vmatpush1.bf16.msra.mxu0 0
        %879 = vmatprep.subr.bf16.mxu0 0
        %880 = vmatpush1.bf16.msra.mxu0 0
        %881 = vmatprep.subr.bf16.mxu0 0
        %882 = vmatpush1.bf16.msra.mxu0 %v822
        %883 = vmatprep.subr.bf16.mxu0 0
        %884 = vmatpush2.bf16.msra.mxu0 0
        %885 = vmatprep.subr.bf16.mxu0 0
        %886 = vmatpush2.bf16.msra.mxu0 0
        %887 = vmatprep.subr.bf16.mxu0 0
        %888 = vmatpush2.bf16.msra.mxu0 0
        %889 = vmatprep.subr.bf16.mxu0 0
        %890 = vmatpush2.bf16.msra.mxu0 0
        %891 = vmatprep.subr.bf16.mxu0 0
        %892 = vmatpush2.bf16.msra.mxu0 0
        %893 = vmatprep.subr.bf16.mxu0 0
        %894 = vmatpush2.bf16.msra.mxu0 0
        %895 = vmatprep.subr.bf16.mxu0 0
        %896 = vmatpush2.bf16.msra.mxu0 0
        %897 = vmatprep.subr.bf16.mxu0 0
        %898 = vmatpush2.bf16.msra.mxu0 0
        %899 = vmatprep.mubr.bf16.mxu0 0
        %900 = vmatmul.mubr.bf16.gmra.mxu0 %v813
        %v901 = vpop.f32.mrf.mxu0
        %v902 = vadd.f32 0.0, %v901
        %v903 = vpop.f32.mrf.mxu0
        %v904 = vpop.f32.mrf.mxu0
        %v905 = vadd.f32 0.0, %v904
        %v906 = vpop.f32.mrf.mxu0
        %907 = vdwg.mxu0
        %v908 = vadd.f32 %v782, %v859
        %v909 = vadd.f32 %v783, %v861
        %v910 = vadd.f32 %v784, %v902
        %v911 = vadd.f32 %v785, %v863
        %v912 = vadd.f32 %v786, %v865
        %v913 = vadd.f32 %v787, %v905
        %v915 = vpack.c.bf16 %v415, %v415
        %v916 = vpack.c.bf16 %v420, %v420
        %v917 = vpack.c.bf16 %v416, %v416
        %s918 = scalar_lea.vmem %s2, 32
        %v919 = vld [vmem:[%s918] sm:$0xf]
        %v920 = vld [vmem:[%s918 + $0x4] sm:$0xf]
        %v923 = vunpack.c.l.b16 %v919
        %v924 = vunpack.c.l.b16 %v920
        %v925 = vpack.c.b16 %v924, %v923
        %v927 = vsel %vm463, %v925, 0
        %v930 = vsel %vm467, %v915, 0
        %v933 = vsel %vm467, %v916, 0
        %v936 = vsel %vm467, %v917, 0
        %938 = vmatprep.subr.bf16.mxu0 0
        %939 = vmatpush1.bf16.msra.mxu0 0
        %940 = vmatprep.subr.bf16.mxu0 0
        %941 = vmatpush1.bf16.msra.mxu0 0
        %942 = vmatprep.subr.bf16.mxu0 0
        %943 = vmatpush1.bf16.msra.mxu0 0
        %944 = vmatprep.subr.bf16.mxu0 0
        %945 = vmatpush1.bf16.msra.mxu0 0
        %946 = vmatprep.subr.bf16.mxu0 0
        %947 = vmatpush1.bf16.msra.mxu0 0
        %948 = vmatprep.subr.bf16.mxu0 0
        %949 = vmatpush1.bf16.msra.mxu0 0
        %950 = vmatprep.subr.bf16.mxu0 0
        %951 = vmatpush1.bf16.msra.mxu0 0
        %952 = vmatprep.subr.bf16.mxu0 %v933
        %953 = vmatpush1.bf16.msra.mxu0 %v930
        %954 = vmatprep.subr.bf16.mxu0 0
        %955 = vmatpush2.bf16.msra.mxu0 0
        %956 = vmatprep.subr.bf16.mxu0 0
        %957 = vmatpush2.bf16.msra.mxu0 0
        %958 = vmatprep.subr.bf16.mxu0 0
        %959 = vmatpush2.bf16.msra.mxu0 0
        %960 = vmatprep.subr.bf16.mxu0 0
        %961 = vmatpush2.bf16.msra.mxu0 0
        %962 = vmatprep.subr.bf16.mxu0 0
        %963 = vmatpush2.bf16.msra.mxu0 0
        %964 = vmatprep.subr.bf16.mxu0 0
        %965 = vmatpush2.bf16.msra.mxu0 0
        %966 = vmatprep.subr.bf16.mxu0 0
        %967 = vmatpush2.bf16.msra.mxu0 0
        %968 = vmatprep.subr.bf16.mxu0 0
        %969 = vmatpush2.bf16.msra.mxu0 0
        %970 = vmatprep.mubr.bf16.mxu0 0
        %971 = vmatmul.mubr.bf16.gmra.mxu0 %v927
        %v972 = vpop.f32.mrf.mxu0
        %v973 = vadd.f32 0.0, %v972
        %v974 = vpop.f32.mrf.mxu0
        %v975 = vadd.f32 0.0, %v974
        %v976 = vpop.f32.mrf.mxu0
        %v977 = vadd.f32 0.0, %v976
        %v978 = vpop.f32.mrf.mxu0
        %v979 = vadd.f32 0.0, %v978
        %980 = vdwg.mxu0
        %981 = vmatprep.subr.bf16.mxu0 0
        %982 = vmatpush1.bf16.msra.mxu0 0
        %983 = vmatprep.subr.bf16.mxu0 0
        %984 = vmatpush1.bf16.msra.mxu0 0
        %985 = vmatprep.subr.bf16.mxu0 0
        %986 = vmatpush1.bf16.msra.mxu0 0
        %987 = vmatprep.subr.bf16.mxu0 0
        %988 = vmatpush1.bf16.msra.mxu0 0
        %989 = vmatprep.subr.bf16.mxu0 0
        %990 = vmatpush1.bf16.msra.mxu0 0
        %991 = vmatprep.subr.bf16.mxu0 0
        %992 = vmatpush1.bf16.msra.mxu0 0
        %993 = vmatprep.subr.bf16.mxu0 0
        %994 = vmatpush1.bf16.msra.mxu0 0
        %995 = vmatprep.subr.bf16.mxu0 0
        %996 = vmatpush1.bf16.msra.mxu0 %v936
        %997 = vmatprep.subr.bf16.mxu0 0
        %998 = vmatpush2.bf16.msra.mxu0 0
        %999 = vmatprep.subr.bf16.mxu0 0
        %1000 = vmatpush2.bf16.msra.mxu0 0
        %1001 = vmatprep.subr.bf16.mxu0 0
        %1002 = vmatpush2.bf16.msra.mxu0 0
        %1003 = vmatprep.subr.bf16.mxu0 0
        %1004 = vmatpush2.bf16.msra.mxu0 0
        %1005 = vmatprep.subr.bf16.mxu0 0
        %1006 = vmatpush2.bf16.msra.mxu0 0
        %1007 = vmatprep.subr.bf16.mxu0 0
        %1008 = vmatpush2.bf16.msra.mxu0 0
        %1009 = vmatprep.subr.bf16.mxu0 0
        %1010 = vmatpush2.bf16.msra.mxu0 0
        %1011 = vmatprep.subr.bf16.mxu0 0
        %1012 = vmatpush2.bf16.msra.mxu0 0
        %1013 = vmatprep.mubr.bf16.mxu0 0
        %1014 = vmatmul.mubr.bf16.gmra.mxu0 %v927
        %v1015 = vpop.f32.mrf.mxu0
        %v1016 = vadd.f32 0.0, %v1015
        %v1017 = vpop.f32.mrf.mxu0
        %v1018 = vpop.f32.mrf.mxu0
        %v1019 = vadd.f32 0.0, %v1018
        %v1020 = vpop.f32.mrf.mxu0
        %1021 = vdwg.mxu0
        %v1022 = vadd.f32 %v908, %v973
        %v1023 = vadd.f32 %v909, %v975
        %v1024 = vadd.f32 %v910, %v1016
        %v1025 = vadd.f32 %v911, %v977
        %v1026 = vadd.f32 %v912, %v979
        %v1027 = vadd.f32 %v913, %v1019
        %1028 = vrot.lane.b32.xlu0 %v415, 127
        %v1029 = vpop.permute.xlu0 %1028
        %1030 = vrot.lane.b32.xlu0 %v420, 127
        %v1031 = vpop.permute.xlu0 %1030
        %1032 = vrot.lane.b32.xlu0 %v416, 127
        %v1033 = vpop.permute.xlu0 %1032
        %vm1034 = vcmask 1039360
        %v1035 = vsel %vm1034, %v1029, %v1031
        %v1036 = vsel %vm1034, %v1031, %v1033
        %vm1040 = vcmask 547840
        %v1041 = vsel %vm1040, %v1033, 0.0
        %v1042 = vpack.c.bf16 %v1035, %v1035
        %v1043 = vpack.c.bf16 %v1036, %v1036
        %v1044 = vpack.c.bf16 %v1041, %v1041
        %s1045 = scalar_lea.vmem %s2, 40
        %v1046 = vld [vmem:[%s1045] sm:$0xf]
        %v1047 = vld [vmem:[%s1045 + $0x4] sm:$0xf]
        %v1050 = vunpack.c.l.b16 %v1046
        %v1051 = vunpack.c.l.b16 %v1047
        %v1052 = vpack.c.b16 %v1051, %v1050
        %v1054 = vsel %vm463, %v1052, 0
        %v1057 = vsel %vm467, %v1042, 0
        %v1060 = vsel %vm467, %v1043, 0
        %v1063 = vsel %vm467, %v1044, 0
        %1065 = vmatprep.subr.bf16.mxu0 0
        %1066 = vmatpush1.bf16.msra.mxu0 0
        %1067 = vmatprep.subr.bf16.mxu0 0
        %1068 = vmatpush1.bf16.msra.mxu0 0
        %1069 = vmatprep.subr.bf16.mxu0 0
        %1070 = vmatpush1.bf16.msra.mxu0 0
        %1071 = vmatprep.subr.bf16.mxu0 0
        %1072 = vmatpush1.bf16.msra.mxu0 0
        %1073 = vmatprep.subr.bf16.mxu0 0
        %1074 = vmatpush1.bf16.msra.mxu0 0
        %1075 = vmatprep.subr.bf16.mxu0 0
        %1076 = vmatpush1.bf16.msra.mxu0 0
        %1077 = vmatprep.subr.bf16.mxu0 0
        %1078 = vmatpush1.bf16.msra.mxu0 0
        %1079 = vmatprep.subr.bf16.mxu0 %v1060
        %1080 = vmatpush1.bf16.msra.mxu0 %v1057
        %1081 = vmatprep.subr.bf16.mxu0 0
        %1082 = vmatpush2.bf16.msra.mxu0 0
        %1083 = vmatprep.subr.bf16.mxu0 0
        %1084 = vmatpush2.bf16.msra.mxu0 0
        %1085 = vmatprep.subr.bf16.mxu0 0
        %1086 = vmatpush2.bf16.msra.mxu0 0
        %1087 = vmatprep.subr.bf16.mxu0 0
        %1088 = vmatpush2.bf16.msra.mxu0 0
        %1089 = vmatprep.subr.bf16.mxu0 0
        %1090 = vmatpush2.bf16.msra.mxu0 0
        %1091 = vmatprep.subr.bf16.mxu0 0
        %1092 = vmatpush2.bf16.msra.mxu0 0
        %1093 = vmatprep.subr.bf16.mxu0 0
        %1094 = vmatpush2.bf16.msra.mxu0 0
        %1095 = vmatprep.subr.bf16.mxu0 0
        %1096 = vmatpush2.bf16.msra.mxu0 0
        %1097 = vmatprep.mubr.bf16.mxu0 0
        %1098 = vmatmul.mubr.bf16.gmra.mxu0 %v1054
        %v1099 = vpop.f32.mrf.mxu0
        %v1100 = vadd.f32 0.0, %v1099
        %v1101 = vpop.f32.mrf.mxu0
        %v1102 = vadd.f32 0.0, %v1101
        %v1103 = vpop.f32.mrf.mxu0
        %v1104 = vadd.f32 0.0, %v1103
        %v1105 = vpop.f32.mrf.mxu0
        %v1106 = vadd.f32 0.0, %v1105
        %1107 = vdwg.mxu0
        %1108 = vmatprep.subr.bf16.mxu0 0
        %1109 = vmatpush1.bf16.msra.mxu0 0
        %1110 = vmatprep.subr.bf16.mxu0 0
        %1111 = vmatpush1.bf16.msra.mxu0 0
        %1112 = vmatprep.subr.bf16.mxu0 0
        %1113 = vmatpush1.bf16.msra.mxu0 0
        %1114 = vmatprep.subr.bf16.mxu0 0
        %1115 = vmatpush1.bf16.msra.mxu0 0
        %1116 = vmatprep.subr.bf16.mxu0 0
        %1117 = vmatpush1.bf16.msra.mxu0 0
        %1118 = vmatprep.subr.bf16.mxu0 0
        %1119 = vmatpush1.bf16.msra.mxu0 0
        %1120 = vmatprep.subr.bf16.mxu0 0
        %1121 = vmatpush1.bf16.msra.mxu0 0
        %1122 = vmatprep.subr.bf16.mxu0 0
        %1123 = vmatpush1.bf16.msra.mxu0 %v1063
        %1124 = vmatprep.subr.bf16.mxu0 0
        %1125 = vmatpush2.bf16.msra.mxu0 0
        %1126 = vmatprep.subr.bf16.mxu0 0
        %1127 = vmatpush2.bf16.msra.mxu0 0
        %1128 = vmatprep.subr.bf16.mxu0 0
        %1129 = vmatpush2.bf16.msra.mxu0 0
        %1130 = vmatprep.subr.bf16.mxu0 0
        %1131 = vmatpush2.bf16.msra.mxu0 0
        %1132 = vmatprep.subr.bf16.mxu0 0
        %1133 = vmatpush2.bf16.msra.mxu0 0
        %1134 = vmatprep.subr.bf16.mxu0 0
        %1135 = vmatpush2.bf16.msra.mxu0 0
        %1136 = vmatprep.subr.bf16.mxu0 0
        %1137 = vmatpush2.bf16.msra.mxu0 0
        %1138 = vmatprep.subr.bf16.mxu0 0
        %1139 = vmatpush2.bf16.msra.mxu0 0
        %1140 = vmatprep.mubr.bf16.mxu0 0
        %1141 = vmatmul.mubr.bf16.gmra.mxu0 %v1054
        %v1142 = vpop.f32.mrf.mxu0
        %v1143 = vadd.f32 0.0, %v1142
        %v1144 = vpop.f32.mrf.mxu0
        %v1145 = vpop.f32.mrf.mxu0
        %v1146 = vadd.f32 0.0, %v1145
        %v1147 = vpop.f32.mrf.mxu0
        %1148 = vdwg.mxu0
        %v1149 = vadd.f32 %v1022, %v1100
        %v1150 = vadd.f32 %v1023, %v1102
        %v1151 = vadd.f32 %v1024, %v1143
        %v1152 = vadd.f32 %v1025, %v1104
        %v1153 = vadd.f32 %v1026, %v1106
        %v1154 = vadd.f32 %v1027, %v1146
        %1155 = vrot.lane.b32.xlu0 %v415, 111
        %v1156 = vpop.permute.xlu0 %1155
        %1157 = vrot.lane.b32.xlu0 %v420, 111
        %v1158 = vpop.permute.xlu0 %1157
        %1159 = vrot.lane.b32.xlu0 %v416, 111
        %v1160 = vpop.permute.xlu0 %1159
        %vm1161 = vcmask 908288
        %v1162 = vsel %vm1161, %v1156, %v1158
        %v1163 = vsel %vm1161, %v1158, %v1160
        %vm1167 = vcmask 416768
        %v1168 = vsel %vm1167, %v1160, 0.0
        %v1169 = vpack.c.bf16 %v1162, %v1162
        %v1170 = vpack.c.bf16 %v1163, %v1163
        %v1171 = vpack.c.bf16 %v1168, %v1168
        %s1172 = scalar_lea.vmem %s2, 48
        %v1173 = vld [vmem:[%s1172] sm:$0xf]
        %v1174 = vld [vmem:[%s1172 + $0x4] sm:$0xf]
        %v1177 = vunpack.c.l.b16 %v1173
        %v1178 = vunpack.c.l.b16 %v1174
        %v1179 = vpack.c.b16 %v1178, %v1177
        %v1181 = vsel %vm463, %v1179, 0
        %v1184 = vsel %vm467, %v1169, 0
        %v1187 = vsel %vm467, %v1170, 0
        %v1190 = vsel %vm467, %v1171, 0
        %1192 = vmatprep.subr.bf16.mxu0 0
        %1193 = vmatpush1.bf16.msra.mxu0 0
        %1194 = vmatprep.subr.bf16.mxu0 0
        %1195 = vmatpush1.bf16.msra.mxu0 0
        %1196 = vmatprep.subr.bf16.mxu0 0
        %1197 = vmatpush1.bf16.msra.mxu0 0
        %1198 = vmatprep.subr.bf16.mxu0 0
        %1199 = vmatpush1.bf16.msra.mxu0 0
        %1200 = vmatprep.subr.bf16.mxu0 0
        %1201 = vmatpush1.bf16.msra.mxu0 0
        %1202 = vmatprep.subr.bf16.mxu0 0
        %1203 = vmatpush1.bf16.msra.mxu0 0
        %1204 = vmatprep.subr.bf16.mxu0 0
        %1205 = vmatpush1.bf16.msra.mxu0 0
        %1206 = vmatprep.subr.bf16.mxu0 %v1187
        %1207 = vmatpush1.bf16.msra.mxu0 %v1184
        %1208 = vmatprep.subr.bf16.mxu0 0
        %1209 = vmatpush2.bf16.msra.mxu0 0
        %1210 = vmatprep.subr.bf16.mxu0 0
        %1211 = vmatpush2.bf16.msra.mxu0 0
        %1212 = vmatprep.subr.bf16.mxu0 0
        %1213 = vmatpush2.bf16.msra.mxu0 0
        %1214 = vmatprep.subr.bf16.mxu0 0
        %1215 = vmatpush2.bf16.msra.mxu0 0
        %1216 = vmatprep.subr.bf16.mxu0 0
        %1217 = vmatpush2.bf16.msra.mxu0 0
        %1218 = vmatprep.subr.bf16.mxu0 0
        %1219 = vmatpush2.bf16.msra.mxu0 0
        %1220 = vmatprep.subr.bf16.mxu0 0
        %1221 = vmatpush2.bf16.msra.mxu0 0
        %1222 = vmatprep.subr.bf16.mxu0 0
        %1223 = vmatpush2.bf16.msra.mxu0 0
        %1224 = vmatprep.mubr.bf16.mxu0 0
        %1225 = vmatmul.mubr.bf16.gmra.mxu0 %v1181
        %v1226 = vpop.f32.mrf.mxu0
        %v1227 = vadd.f32 0.0, %v1226
        %v1228 = vpop.f32.mrf.mxu0
        %v1229 = vadd.f32 0.0, %v1228
        %v1230 = vpop.f32.mrf.mxu0
        %v1231 = vadd.f32 0.0, %v1230
        %v1232 = vpop.f32.mrf.mxu0
        %v1233 = vadd.f32 0.0, %v1232
        %1234 = vdwg.mxu0
        %1235 = vmatprep.subr.bf16.mxu0 0
        %1236 = vmatpush1.bf16.msra.mxu0 0
        %1237 = vmatprep.subr.bf16.mxu0 0
        %1238 = vmatpush1.bf16.msra.mxu0 0
        %1239 = vmatprep.subr.bf16.mxu0 0
        %1240 = vmatpush1.bf16.msra.mxu0 0
        %1241 = vmatprep.subr.bf16.mxu0 0
        %1242 = vmatpush1.bf16.msra.mxu0 0
        %1243 = vmatprep.subr.bf16.mxu0 0
        %1244 = vmatpush1.bf16.msra.mxu0 0
        %1245 = vmatprep.subr.bf16.mxu0 0
        %1246 = vmatpush1.bf16.msra.mxu0 0
        %1247 = vmatprep.subr.bf16.mxu0 0
        %1248 = vmatpush1.bf16.msra.mxu0 0
        %1249 = vmatprep.subr.bf16.mxu0 0
        %1250 = vmatpush1.bf16.msra.mxu0 %v1190
        %1251 = vmatprep.subr.bf16.mxu0 0
        %1252 = vmatpush2.bf16.msra.mxu0 0
        %1253 = vmatprep.subr.bf16.mxu0 0
        %1254 = vmatpush2.bf16.msra.mxu0 0
        %1255 = vmatprep.subr.bf16.mxu0 0
        %1256 = vmatpush2.bf16.msra.mxu0 0
        %1257 = vmatprep.subr.bf16.mxu0 0
        %1258 = vmatpush2.bf16.msra.mxu0 0
        %1259 = vmatprep.subr.bf16.mxu0 0
        %1260 = vmatpush2.bf16.msra.mxu0 0
        %1261 = vmatprep.subr.bf16.mxu0 0
        %1262 = vmatpush2.bf16.msra.mxu0 0
        %1263 = vmatprep.subr.bf16.mxu0 0
        %1264 = vmatpush2.bf16.msra.mxu0 0
        %1265 = vmatprep.subr.bf16.mxu0 0
        %1266 = vmatpush2.bf16.msra.mxu0 0
        %1267 = vmatprep.mubr.bf16.mxu0 0
        %1268 = vmatmul.mubr.bf16.gmra.mxu0 %v1181
        %v1269 = vpop.f32.mrf.mxu0
        %v1270 = vadd.f32 0.0, %v1269
        %v1271 = vpop.f32.mrf.mxu0
        %v1272 = vpop.f32.mrf.mxu0
        %v1273 = vadd.f32 0.0, %v1272
        %v1274 = vpop.f32.mrf.mxu0
        %1275 = vdwg.mxu0
        %v1276 = vadd.f32 %v1149, %v1227
        %v1277 = vadd.f32 %v1150, %v1229
        %v1278 = vadd.f32 %v1151, %v1270
        %v1279 = vadd.f32 %v1152, %v1231
        %v1280 = vadd.f32 %v1153, %v1233
        %v1281 = vadd.f32 %v1154, %v1273
        %1282 = vrot.lane.b32.xlu0 %v415, 110
        %v1283 = vpop.permute.xlu0 %1282
        %1284 = vrot.lane.b32.xlu0 %v420, 110
        %v1285 = vpop.permute.xlu0 %1284
        %1286 = vrot.lane.b32.xlu0 %v416, 110
        %v1287 = vpop.permute.xlu0 %1286
        %vm1288 = vcmask 900096
        %v1289 = vsel %vm1288, %v1283, %v1285
        %v1290 = vsel %vm1288, %v1285, %v1287
        %vm1294 = vcmask 408576
        %v1295 = vsel %vm1294, %v1287, 0.0
        %v1296 = vpack.c.bf16 %v1289, %v1289
        %v1297 = vpack.c.bf16 %v1290, %v1290
        %v1298 = vpack.c.bf16 %v1295, %v1295
        %s1299 = scalar_lea.vmem %s2, 56
        %v1300 = vld [vmem:[%s1299] sm:$0xf]
        %v1301 = vld [vmem:[%s1299 + $0x4] sm:$0xf]
        %v1304 = vunpack.c.l.b16 %v1300
        %v1305 = vunpack.c.l.b16 %v1301
        %v1306 = vpack.c.b16 %v1305, %v1304
        %v1308 = vsel %vm463, %v1306, 0
        %v1311 = vsel %vm467, %v1296, 0
        %v1314 = vsel %vm467, %v1297, 0
        %v1317 = vsel %vm467, %v1298, 0
        %1319 = vmatprep.subr.bf16.mxu0 0
        %1320 = vmatpush1.bf16.msra.mxu0 0
        %1321 = vmatprep.subr.bf16.mxu0 0
        %1322 = vmatpush1.bf16.msra.mxu0 0
        %1323 = vmatprep.subr.bf16.mxu0 0
        %1324 = vmatpush1.bf16.msra.mxu0 0
        %1325 = vmatprep.subr.bf16.mxu0 0
        %1326 = vmatpush1.bf16.msra.mxu0 0
        %1327 = vmatprep.subr.bf16.mxu0 0
        %1328 = vmatpush1.bf16.msra.mxu0 0
        %1329 = vmatprep.subr.bf16.mxu0 0
        %1330 = vmatpush1.bf16.msra.mxu0 0
        %1331 = vmatprep.subr.bf16.mxu0 0
        %1332 = vmatpush1.bf16.msra.mxu0 0
        %1333 = vmatprep.subr.bf16.mxu0 %v1314
        %1334 = vmatpush1.bf16.msra.mxu0 %v1311
        %1335 = vmatprep.subr.bf16.mxu0 0
        %1336 = vmatpush2.bf16.msra.mxu0 0
        %1337 = vmatprep.subr.bf16.mxu0 0
        %1338 = vmatpush2.bf16.msra.mxu0 0
        %1339 = vmatprep.subr.bf16.mxu0 0
        %1340 = vmatpush2.bf16.msra.mxu0 0
        %1341 = vmatprep.subr.bf16.mxu0 0
        %1342 = vmatpush2.bf16.msra.mxu0 0
        %1343 = vmatprep.subr.bf16.mxu0 0
        %1344 = vmatpush2.bf16.msra.mxu0 0
        %1345 = vmatprep.subr.bf16.mxu0 0
        %1346 = vmatpush2.bf16.msra.mxu0 0
        %1347 = vmatprep.subr.bf16.mxu0 0
        %1348 = vmatpush2.bf16.msra.mxu0 0
        %1349 = vmatprep.subr.bf16.mxu0 0
        %1350 = vmatpush2.bf16.msra.mxu0 0
        %1351 = vmatprep.mubr.bf16.mxu0 0
        %1352 = vmatmul.mubr.bf16.gmra.mxu0 %v1308
        %v1353 = vpop.f32.mrf.mxu0
        %v1354 = vadd.f32 0.0, %v1353
        %v1355 = vpop.f32.mrf.mxu0
        %v1356 = vadd.f32 0.0, %v1355
        %v1357 = vpop.f32.mrf.mxu0
        %v1358 = vadd.f32 0.0, %v1357
        %v1359 = vpop.f32.mrf.mxu0
        %v1360 = vadd.f32 0.0, %v1359
        %1361 = vdwg.mxu0
        %1362 = vmatprep.subr.bf16.mxu0 0
        %1363 = vmatpush1.bf16.msra.mxu0 0
        %1364 = vmatprep.subr.bf16.mxu0 0
        %1365 = vmatpush1.bf16.msra.mxu0 0
        %1366 = vmatprep.subr.bf16.mxu0 0
        %1367 = vmatpush1.bf16.msra.mxu0 0
        %1368 = vmatprep.subr.bf16.mxu0 0
        %1369 = vmatpush1.bf16.msra.mxu0 0
        %1370 = vmatprep.subr.bf16.mxu0 0
        %1371 = vmatpush1.bf16.msra.mxu0 0
        %1372 = vmatprep.subr.bf16.mxu0 0
        %1373 = vmatpush1.bf16.msra.mxu0 0
        %1374 = vmatprep.subr.bf16.mxu0 0
        %1375 = vmatpush1.bf16.msra.mxu0 0
        %1376 = vmatprep.subr.bf16.mxu0 0
        %1377 = vmatpush1.bf16.msra.mxu0 %v1317
        %1378 = vmatprep.subr.bf16.mxu0 0
        %1379 = vmatpush2.bf16.msra.mxu0 0
        %1380 = vmatprep.subr.bf16.mxu0 0
        %1381 = vmatpush2.bf16.msra.mxu0 0
        %1382 = vmatprep.subr.bf16.mxu0 0
        %1383 = vmatpush2.bf16.msra.mxu0 0
        %1384 = vmatprep.subr.bf16.mxu0 0
        %1385 = vmatpush2.bf16.msra.mxu0 0
        %1386 = vmatprep.subr.bf16.mxu0 0
        %1387 = vmatpush2.bf16.msra.mxu0 0
        %1388 = vmatprep.subr.bf16.mxu0 0
        %1389 = vmatpush2.bf16.msra.mxu0 0
        %1390 = vmatprep.subr.bf16.mxu0 0
        %1391 = vmatpush2.bf16.msra.mxu0 0
        %1392 = vmatprep.subr.bf16.mxu0 0
        %1393 = vmatpush2.bf16.msra.mxu0 0
        %1394 = vmatprep.mubr.bf16.mxu0 0
        %1395 = vmatmul.mubr.bf16.gmra.mxu0 %v1308
        %v1396 = vpop.f32.mrf.mxu0
        %v1397 = vadd.f32 0.0, %v1396
        %v1398 = vpop.f32.mrf.mxu0
        %v1399 = vpop.f32.mrf.mxu0
        %v1400 = vadd.f32 0.0, %v1399
        %v1401 = vpop.f32.mrf.mxu0
        %1402 = vdwg.mxu0
        %v1403 = vadd.f32 %v1276, %v1354
        %v1404 = vadd.f32 %v1277, %v1356
        %v1405 = vadd.f32 %v1278, %v1397
        %v1406 = vadd.f32 %v1279, %v1358
        %v1407 = vadd.f32 %v1280, %v1360
        %v1408 = vadd.f32 %v1281, %v1400
        %1409 = vrot.lane.b32.xlu0 %v415, 109
        %v1410 = vpop.permute.xlu0 %1409
        %1411 = vrot.lane.b32.xlu0 %v420, 109
        %v1412 = vpop.permute.xlu0 %1411
        %1413 = vrot.lane.b32.xlu0 %v416, 109
        %v1414 = vpop.permute.xlu0 %1413
        %vm1415 = vcmask 891904
        %v1416 = vsel %vm1415, %v1410, %v1412
        %v1417 = vsel %vm1415, %v1412, %v1414
        %vm1421 = vcmask 400384
        %v1422 = vsel %vm1421, %v1414, 0.0
        %v1423 = vpack.c.bf16 %v1416, %v1416
        %v1424 = vpack.c.bf16 %v1417, %v1417
        %v1425 = vpack.c.bf16 %v1422, %v1422
        %s1426 = scalar_lea.vmem %s2, 64
        %v1427 = vld [vmem:[%s1426] sm:$0xf]
        %v1428 = vld [vmem:[%s1426 + $0x4] sm:$0xf]
        %v1431 = vunpack.c.l.b16 %v1427
        %v1432 = vunpack.c.l.b16 %v1428
        %v1433 = vpack.c.b16 %v1432, %v1431
        %v1435 = vsel %vm463, %v1433, 0
        %v1438 = vsel %vm467, %v1423, 0
        %v1441 = vsel %vm467, %v1424, 0
        %v1444 = vsel %vm467, %v1425, 0
        %1446 = vmatprep.subr.bf16.mxu0 0
        %1447 = vmatpush1.bf16.msra.mxu0 0
        %1448 = vmatprep.subr.bf16.mxu0 0
        %1449 = vmatpush1.bf16.msra.mxu0 0
        %1450 = vmatprep.subr.bf16.mxu0 0
        %1451 = vmatpush1.bf16.msra.mxu0 0
        %1452 = vmatprep.subr.bf16.mxu0 0
        %1453 = vmatpush1.bf16.msra.mxu0 0
        %1454 = vmatprep.subr.bf16.mxu0 0
        %1455 = vmatpush1.bf16.msra.mxu0 0
        %1456 = vmatprep.subr.bf16.mxu0 0
        %1457 = vmatpush1.bf16.msra.mxu0 0
        %1458 = vmatprep.subr.bf16.mxu0 0
        %1459 = vmatpush1.bf16.msra.mxu0 0
        %1460 = vmatprep.subr.bf16.mxu0 %v1441
        %1461 = vmatpush1.bf16.msra.mxu0 %v1438
        %1462 = vmatprep.subr.bf16.mxu0 0
        %1463 = vmatpush2.bf16.msra.mxu0 0
        %1464 = vmatprep.subr.bf16.mxu0 0
        %1465 = vmatpush2.bf16.msra.mxu0 0
        %1466 = vmatprep.subr.bf16.mxu0 0
        %1467 = vmatpush2.bf16.msra.mxu0 0
        %1468 = vmatprep.subr.bf16.mxu0 0
        %1469 = vmatpush2.bf16.msra.mxu0 0
        %1470 = vmatprep.subr.bf16.mxu0 0
        %1471 = vmatpush2.bf16.msra.mxu0 0
        %1472 = vmatprep.subr.bf16.mxu0 0
        %1473 = vmatpush2.bf16.msra.mxu0 0
        %1474 = vmatprep.subr.bf16.mxu0 0
        %1475 = vmatpush2.bf16.msra.mxu0 0
        %1476 = vmatprep.subr.bf16.mxu0 0
        %1477 = vmatpush2.bf16.msra.mxu0 0
        %1478 = vmatprep.mubr.bf16.mxu0 0
        %1479 = vmatmul.mubr.bf16.gmra.mxu0 %v1435
        %v1480 = vpop.f32.mrf.mxu0
        %v1481 = vadd.f32 0.0, %v1480
        %v1482 = vpop.f32.mrf.mxu0
        %v1483 = vadd.f32 0.0, %v1482
        %v1484 = vpop.f32.mrf.mxu0
        %v1485 = vadd.f32 0.0, %v1484
        %v1486 = vpop.f32.mrf.mxu0
        %v1487 = vadd.f32 0.0, %v1486
        %1488 = vdwg.mxu0
        %1489 = vmatprep.subr.bf16.mxu0 0
        %1490 = vmatpush1.bf16.msra.mxu0 0
        %1491 = vmatprep.subr.bf16.mxu0 0
        %1492 = vmatpush1.bf16.msra.mxu0 0
        %1493 = vmatprep.subr.bf16.mxu0 0
        %1494 = vmatpush1.bf16.msra.mxu0 0
        %1495 = vmatprep.subr.bf16.mxu0 0
        %1496 = vmatpush1.bf16.msra.mxu0 0
        %1497 = vmatprep.subr.bf16.mxu0 0
        %1498 = vmatpush1.bf16.msra.mxu0 0
        %1499 = vmatprep.subr.bf16.mxu0 0
        %1500 = vmatpush1.bf16.msra.mxu0 0
        %1501 = vmatprep.subr.bf16.mxu0 0
        %1502 = vmatpush1.bf16.msra.mxu0 0
        %1503 = vmatprep.subr.bf16.mxu0 0
        %1504 = vmatpush1.bf16.msra.mxu0 %v1444
        %1505 = vmatprep.subr.bf16.mxu0 0
        %1506 = vmatpush2.bf16.msra.mxu0 0
        %1507 = vmatprep.subr.bf16.mxu0 0
        %1508 = vmatpush2.bf16.msra.mxu0 0
        %1509 = vmatprep.subr.bf16.mxu0 0
        %1510 = vmatpush2.bf16.msra.mxu0 0
        %1511 = vmatprep.subr.bf16.mxu0 0
        %1512 = vmatpush2.bf16.msra.mxu0 0
        %1513 = vmatprep.subr.bf16.mxu0 0
        %1514 = vmatpush2.bf16.msra.mxu0 0
        %1515 = vmatprep.subr.bf16.mxu0 0
        %1516 = vmatpush2.bf16.msra.mxu0 0
        %1517 = vmatprep.subr.bf16.mxu0 0
        %1518 = vmatpush2.bf16.msra.mxu0 0
        %1519 = vmatprep.subr.bf16.mxu0 0
        %1520 = vmatpush2.bf16.msra.mxu0 0
        %1521 = vmatprep.mubr.bf16.mxu0 0
        %1522 = vmatmul.mubr.bf16.gmra.mxu0 %v1435
        %v1523 = vpop.f32.mrf.mxu0
        %v1524 = vadd.f32 0.0, %v1523
        %v1525 = vpop.f32.mrf.mxu0
        %v1526 = vpop.f32.mrf.mxu0
        %v1527 = vadd.f32 0.0, %v1526
        %v1528 = vpop.f32.mrf.mxu0
        %1529 = vdwg.mxu0
        %v1530 = vadd.f32 %v1403, %v1481
        %v1531 = vadd.f32 %v1404, %v1483
        %v1532 = vadd.f32 %v1405, %v1524
        %v1533 = vadd.f32 %v1406, %v1485
        %v1534 = vadd.f32 %v1407, %v1487
        %v1535 = vadd.f32 %v1408, %v1527
        %v1536 = vld [vmem:[%s3] sm:$0xff]
        %v1537 = vld [vmem:[%s3 + $0x8] sm:$0xff]
        %1539 = vset.pattern.permute.xlu0 0
        %1540 = vperm.xlu0 %1539, %v1536
        %v1541 = vpop.permute.xlu0 %1540
        %1544 = vset.pattern.permute.xlu0 0
        %1545 = vperm.xlu0 %1544, %v1537
        %v1546 = vpop.permute.xlu0 %1545
        %v1548 = vadd.f32 %v1530, %v1541
        %v1549 = vadd.f32 %v1531, %v1541
        %v1550 = vadd.f32 %v1532, %v1541
        %v1551 = vadd.f32 %v1533, %v1546
        %v1552 = vadd.f32 %v1534, %v1546
        %v1553 = vadd.f32 %v1535, %v1546
        %v1554 = vxor.u32 %v1548, 2147483648
        %v1555 = vxor.u32 %v1549, 2147483648
        %v1556 = vxor.u32 %v1550, 2147483648
        %v1557 = vxor.u32 %v1551, 2147483648
        %v1558 = vxor.u32 %v1552, 2147483648
        %v1559 = vxor.u32 %v1553, 2147483648
        %v1560 = vmul.f32 %v1554, 1.442695
        %v1561 = vpow.pop %v1560
        %v1562 = vmul.f32 %v1555, 1.442695
        %v1563 = vpow.pop %v1562
        %v1564 = vmul.f32 %v1556, 1.442695
        %v1565 = vpow.pop %v1564
        %v1566 = vmul.f32 %v1557, 1.442695
        %v1567 = vpow.pop %v1566
        %v1568 = vmul.f32 %v1558, 1.442695
        %v1569 = vpow.pop %v1568
        %v1570 = vmul.f32 %v1559, 1.442695
        %v1571 = vpow.pop %v1570
        %v1572 = vadd.f32 %v1561, 1.0
        %v1573 = vadd.f32 %v1563, 1.0
        %v1574 = vadd.f32 %v1565, 1.0
        %v1575 = vadd.f32 %v1567, 1.0
        %v1576 = vadd.f32 %v1569, 1.0
        %v1577 = vadd.f32 %v1571, 1.0
        %v1578 = vrcp.pop %v1572
        %v1579 = vmul.f32 1.0, %v1578
        %v1580 = vrcp.pop %v1573
        %v1581 = vmul.f32 1.0, %v1580
        %v1582 = vrcp.pop %v1574
        %v1583 = vmul.f32 1.0, %v1582
        %v1584 = vrcp.pop %v1575
        %v1585 = vmul.f32 1.0, %v1584
        %v1586 = vrcp.pop %v1576
        %v1587 = vmul.f32 1.0, %v1586
        %v1588 = vrcp.pop %v1577
        %v1589 = vmul.f32 1.0, %v1588
        %v1590 = vmul.f32 %v1548, %v1579
        %v1591 = vmul.f32 %v1549, %v1581
        %v1592 = vmul.f32 %v1550, %v1583
        %v1593 = vmul.f32 %v1551, %v1585
        %v1594 = vmul.f32 %v1552, %v1587
        %v1595 = vmul.f32 %v1553, %v1589
        %v1597 = vlaneseq
        %v1598 = vshrl.u32 %v1597, 7
        %v1599 = vsub.s32 0, %v1598
        %v1600 = vrot.slane %v417, %v1599
        %v1601 = vlaneseq
        %v1602 = vshrl.u32 %v1601, 7
        %v1603 = vsub.s32 1, %v1602
        %v1604 = vrot.slane %v417, %v1603
        %v1605 = vlaneseq
        %v1606 = vshrl.u32 %v1605, 7
        %v1607 = vsub.s32 2, %v1606
        %v1608 = vrot.slane %v417, %v1607
        %v1612 = vmul.f32 %v1590, %v1600
        %v1613 = vmul.f32 %v1591, %v1604
        %v1614 = vmul.f32 %v1592, %v1608
        %v1615 = vmul.f32 %v1593, %v1600
        %v1616 = vmul.f32 %v1594, %v1604
        %v1617 = vmul.f32 %v1595, %v1608
        %1624 = vrot.lane.b32.xlu0 %v1612, 19
        %v1625 = vpop.permute.xlu0 %1624
        %1626 = vrot.lane.b32.xlu0 %v1613, 19
        %v1627 = vpop.permute.xlu0 %1626
        %1628 = vrot.lane.b32.xlu0 %v1614, 19
        %v1629 = vpop.permute.xlu0 %1628
        %1630 = vrot.lane.b32.xlu0 %v1615, 19
        %v1631 = vpop.permute.xlu0 %1630
        %1632 = vrot.lane.b32.xlu0 %v1616, 19
        %v1633 = vpop.permute.xlu0 %1632
        %1634 = vrot.lane.b32.xlu0 %v1617, 19
        %v1635 = vpop.permute.xlu0 %1634
        %v1636 = vsel %vm427, %v1625, %v1627
        %v1637 = vsel %vm427, %v1627, %v1629
        %v1638 = vsel %vm427, %v1631, %v1633
        %v1639 = vsel %vm427, %v1633, %v1635
        %v1646 = vsel %vm427, 0.0, %v1625
        %v1647 = vsel %vm427, 0.0, %v1631
        %v1648 = vld [vmem:[%s4] sm:$0xff]
        %v1649 = vld [vmem:[%s4 + $0x8] sm:$0xff]
        %1651 = vset.pattern.permute.xlu0 0
        %1652 = vperm.xlu0 %1651, %v1648
        %v1653 = vpop.permute.xlu0 %1652
        %1656 = vset.pattern.permute.xlu0 0
        %1657 = vperm.xlu0 %1656, %v1649
        %v1658 = vpop.permute.xlu0 %1657
        %v1660 = vmul.f32 %v1646, %v1653
        %v1661 = vmul.f32 %v1636, %v1653
        %v1662 = vmul.f32 %v1637, %v1653
        %v1663 = vmul.f32 %v1647, %v1658
        %v1664 = vmul.f32 %v1638, %v1658
        %v1665 = vmul.f32 %v1639, %v1658
        %1666 = vrot.lane.b32.xlu0 %v1612, 18
        %v1667 = vpop.permute.xlu0 %1666
        %1668 = vrot.lane.b32.xlu0 %v1613, 18
        %v1669 = vpop.permute.xlu0 %1668
        %1670 = vrot.lane.b32.xlu0 %v1614, 18
        %v1671 = vpop.permute.xlu0 %1670
        %1672 = vrot.lane.b32.xlu0 %v1615, 18
        %v1673 = vpop.permute.xlu0 %1672
        %1674 = vrot.lane.b32.xlu0 %v1616, 18
        %v1675 = vpop.permute.xlu0 %1674
        %1676 = vrot.lane.b32.xlu0 %v1617, 18
        %v1677 = vpop.permute.xlu0 %1676
        %v1678 = vsel %vm445, %v1667, %v1669
        %v1679 = vsel %vm445, %v1669, %v1671
        %v1680 = vsel %vm445, %v1673, %v1675
        %v1681 = vsel %vm445, %v1675, %v1677
        %v1688 = vsel %vm445, 0.0, %v1667
        %v1689 = vsel %vm445, 0.0, %v1673
        %s1690 = scalar_lea.vmem %s4, 16
        %v1691 = vld [vmem:[%s1690] sm:$0xff]
        %v1692 = vld [vmem:[%s1690 + $0x8] sm:$0xff]
        %1694 = vset.pattern.permute.xlu0 0
        %1695 = vperm.xlu0 %1694, %v1691
        %v1696 = vpop.permute.xlu0 %1695
        %1699 = vset.pattern.permute.xlu0 0
        %1700 = vperm.xlu0 %1699, %v1692
        %v1701 = vpop.permute.xlu0 %1700
        %v1703 = vmul.f32 %v1688, %v1696
        %v1704 = vmul.f32 %v1678, %v1696
        %v1705 = vmul.f32 %v1679, %v1696
        %v1706 = vmul.f32 %v1689, %v1701
        %v1707 = vmul.f32 %v1680, %v1701
        %v1708 = vmul.f32 %v1681, %v1701
        %v1709 = vadd.f32 %v1660, %v1703
        %v1710 = vadd.f32 %v1661, %v1704
        %v1711 = vadd.f32 %v1662, %v1705
        %v1712 = vadd.f32 %v1663, %v1706
        %v1713 = vadd.f32 %v1664, %v1707
        %v1714 = vadd.f32 %v1665, %v1708
        %1715 = vrot.lane.b32.xlu0 %v1612, 17
        %v1716 = vpop.permute.xlu0 %1715
        %1717 = vrot.lane.b32.xlu0 %v1613, 17
        %v1718 = vpop.permute.xlu0 %1717
        %1719 = vrot.lane.b32.xlu0 %v1614, 17
        %v1720 = vpop.permute.xlu0 %1719
        %1721 = vrot.lane.b32.xlu0 %v1615, 17
        %v1722 = vpop.permute.xlu0 %1721
        %1723 = vrot.lane.b32.xlu0 %v1616, 17
        %v1724 = vpop.permute.xlu0 %1723
        %1725 = vrot.lane.b32.xlu0 %v1617, 17
        %v1726 = vpop.permute.xlu0 %1725
        %v1727 = vsel %vm668, %v1716, %v1718
        %v1728 = vsel %vm668, %v1718, %v1720
        %v1729 = vsel %vm668, %v1722, %v1724
        %v1730 = vsel %vm668, %v1724, %v1726
        %v1737 = vsel %vm668, 0.0, %v1716
        %v1738 = vsel %vm668, 0.0, %v1722
        %s1739 = scalar_lea.vmem %s4, 32
        %v1740 = vld [vmem:[%s1739] sm:$0xff]
        %v1741 = vld [vmem:[%s1739 + $0x8] sm:$0xff]
        %1743 = vset.pattern.permute.xlu0 0
        %1744 = vperm.xlu0 %1743, %v1740
        %v1745 = vpop.permute.xlu0 %1744
        %1748 = vset.pattern.permute.xlu0 0
        %1749 = vperm.xlu0 %1748, %v1741
        %v1750 = vpop.permute.xlu0 %1749
        %v1752 = vmul.f32 %v1737, %v1745
        %v1753 = vmul.f32 %v1727, %v1745
        %v1754 = vmul.f32 %v1728, %v1745
        %v1755 = vmul.f32 %v1738, %v1750
        %v1756 = vmul.f32 %v1729, %v1750
        %v1757 = vmul.f32 %v1730, %v1750
        %v1758 = vadd.f32 %v1709, %v1752
        %v1759 = vadd.f32 %v1710, %v1753
        %v1760 = vadd.f32 %v1711, %v1754
        %v1761 = vadd.f32 %v1712, %v1755
        %v1762 = vadd.f32 %v1713, %v1756
        %v1763 = vadd.f32 %v1714, %v1757
        %1764 = vrot.lane.b32.xlu0 %v1612, 1
        %v1765 = vpop.permute.xlu0 %1764
        %1766 = vrot.lane.b32.xlu0 %v1613, 1
        %v1767 = vpop.permute.xlu0 %1766
        %1768 = vrot.lane.b32.xlu0 %v1614, 1
        %v1769 = vpop.permute.xlu0 %1768
        %1770 = vrot.lane.b32.xlu0 %v1615, 1
        %v1771 = vpop.permute.xlu0 %1770
        %1772 = vrot.lane.b32.xlu0 %v1616, 1
        %v1773 = vpop.permute.xlu0 %1772
        %1774 = vrot.lane.b32.xlu0 %v1617, 1
        %v1775 = vpop.permute.xlu0 %1774
        %v1776 = vsel %vm794, %v1765, %v1767
        %v1777 = vsel %vm794, %v1767, %v1769
        %v1778 = vsel %vm794, %v1771, %v1773
        %v1779 = vsel %vm794, %v1773, %v1775
        %v1786 = vsel %vm794, 0.0, %v1765
        %v1787 = vsel %vm794, 0.0, %v1771
        %s1788 = scalar_lea.vmem %s4, 48
        %v1789 = vld [vmem:[%s1788] sm:$0xff]
        %v1790 = vld [vmem:[%s1788 + $0x8] sm:$0xff]
        %1792 = vset.pattern.permute.xlu0 0
        %1793 = vperm.xlu0 %1792, %v1789
        %v1794 = vpop.permute.xlu0 %1793
        %1797 = vset.pattern.permute.xlu0 0
        %1798 = vperm.xlu0 %1797, %v1790
        %v1799 = vpop.permute.xlu0 %1798
        %v1801 = vmul.f32 %v1786, %v1794
        %v1802 = vmul.f32 %v1776, %v1794
        %v1803 = vmul.f32 %v1777, %v1794
        %v1804 = vmul.f32 %v1787, %v1799
        %v1805 = vmul.f32 %v1778, %v1799
        %v1806 = vmul.f32 %v1779, %v1799
        %v1807 = vadd.f32 %v1758, %v1801
        %v1808 = vadd.f32 %v1759, %v1802
        %v1809 = vadd.f32 %v1760, %v1803
        %v1810 = vadd.f32 %v1761, %v1804
        %v1811 = vadd.f32 %v1762, %v1805
        %v1812 = vadd.f32 %v1763, %v1806
        %s1813 = scalar_lea.vmem %s4, 64
        %v1814 = vld [vmem:[%s1813] sm:$0xff]
        %v1815 = vld [vmem:[%s1813 + $0x8] sm:$0xff]
        %1817 = vset.pattern.permute.xlu0 0
        %1818 = vperm.xlu0 %1817, %v1814
        %v1819 = vpop.permute.xlu0 %1818
        %1822 = vset.pattern.permute.xlu0 0
        %1823 = vperm.xlu0 %1822, %v1815
        %v1824 = vpop.permute.xlu0 %1823
        %v1826 = vmul.f32 %v1612, %v1819
        %v1827 = vmul.f32 %v1613, %v1819
        %v1828 = vmul.f32 %v1614, %v1819
        %v1829 = vmul.f32 %v1615, %v1824
        %v1830 = vmul.f32 %v1616, %v1824
        %v1831 = vmul.f32 %v1617, %v1824
        %v1832 = vadd.f32 %v1807, %v1826
        %v1833 = vadd.f32 %v1808, %v1827
        %v1834 = vadd.f32 %v1809, %v1828
        %v1835 = vadd.f32 %v1810, %v1829
        %v1836 = vadd.f32 %v1811, %v1830
        %v1837 = vadd.f32 %v1812, %v1831
        %1838 = vrot.lane.b32.xlu0 %v1612, 127
        %v1839 = vpop.permute.xlu0 %1838
        %1840 = vrot.lane.b32.xlu0 %v1613, 127
        %v1841 = vpop.permute.xlu0 %1840
        %1842 = vrot.lane.b32.xlu0 %v1614, 127
        %v1843 = vpop.permute.xlu0 %1842
        %1844 = vrot.lane.b32.xlu0 %v1615, 127
        %v1845 = vpop.permute.xlu0 %1844
        %1846 = vrot.lane.b32.xlu0 %v1616, 127
        %v1847 = vpop.permute.xlu0 %1846
        %1848 = vrot.lane.b32.xlu0 %v1617, 127
        %v1849 = vpop.permute.xlu0 %1848
        %v1850 = vsel %vm1034, %v1839, %v1841
        %v1851 = vsel %vm1034, %v1841, %v1843
        %v1852 = vsel %vm1034, %v1845, %v1847
        %v1853 = vsel %vm1034, %v1847, %v1849
        %v1860 = vsel %vm1040, %v1843, 0.0
        %v1861 = vsel %vm1040, %v1849, 0.0
        %s1862 = scalar_lea.vmem %s4, 80
        %v1863 = vld [vmem:[%s1862] sm:$0xff]
        %v1864 = vld [vmem:[%s1862 + $0x8] sm:$0xff]
        %1866 = vset.pattern.permute.xlu0 0
        %1867 = vperm.xlu0 %1866, %v1863
        %v1868 = vpop.permute.xlu0 %1867
        %1871 = vset.pattern.permute.xlu0 0
        %1872 = vperm.xlu0 %1871, %v1864
        %v1873 = vpop.permute.xlu0 %1872
        %v1875 = vmul.f32 %v1850, %v1868
        %v1876 = vmul.f32 %v1851, %v1868
        %v1877 = vmul.f32 %v1860, %v1868
        %v1878 = vmul.f32 %v1852, %v1873
        %v1879 = vmul.f32 %v1853, %v1873
        %v1880 = vmul.f32 %v1861, %v1873
        %v1881 = vadd.f32 %v1832, %v1875
        %v1882 = vadd.f32 %v1833, %v1876
        %v1883 = vadd.f32 %v1834, %v1877
        %v1884 = vadd.f32 %v1835, %v1878
        %v1885 = vadd.f32 %v1836, %v1879
        %v1886 = vadd.f32 %v1837, %v1880
        %1887 = vrot.lane.b32.xlu0 %v1612, 111
        %v1888 = vpop.permute.xlu0 %1887
        %1889 = vrot.lane.b32.xlu0 %v1613, 111
        %v1890 = vpop.permute.xlu0 %1889
        %1891 = vrot.lane.b32.xlu0 %v1614, 111
        %v1892 = vpop.permute.xlu0 %1891
        %1893 = vrot.lane.b32.xlu0 %v1615, 111
        %v1894 = vpop.permute.xlu0 %1893
        %1895 = vrot.lane.b32.xlu0 %v1616, 111
        %v1896 = vpop.permute.xlu0 %1895
        %1897 = vrot.lane.b32.xlu0 %v1617, 111
        %v1898 = vpop.permute.xlu0 %1897
        %v1899 = vsel %vm1161, %v1888, %v1890
        %v1900 = vsel %vm1161, %v1890, %v1892
        %v1901 = vsel %vm1161, %v1894, %v1896
        %v1902 = vsel %vm1161, %v1896, %v1898
        %v1909 = vsel %vm1167, %v1892, 0.0
        %v1910 = vsel %vm1167, %v1898, 0.0
        %s1911 = scalar_lea.vmem %s4, 96
        %v1912 = vld [vmem:[%s1911] sm:$0xff]
        %v1913 = vld [vmem:[%s1911 + $0x8] sm:$0xff]
        %1915 = vset.pattern.permute.xlu0 0
        %1916 = vperm.xlu0 %1915, %v1912
        %v1917 = vpop.permute.xlu0 %1916
        %1920 = vset.pattern.permute.xlu0 0
        %1921 = vperm.xlu0 %1920, %v1913
        %v1922 = vpop.permute.xlu0 %1921
        %v1924 = vmul.f32 %v1899, %v1917
        %v1925 = vmul.f32 %v1900, %v1917
        %v1926 = vmul.f32 %v1909, %v1917
        %v1927 = vmul.f32 %v1901, %v1922
        %v1928 = vmul.f32 %v1902, %v1922
        %v1929 = vmul.f32 %v1910, %v1922
        %v1930 = vadd.f32 %v1881, %v1924
        %v1931 = vadd.f32 %v1882, %v1925
        %v1932 = vadd.f32 %v1883, %v1926
        %v1933 = vadd.f32 %v1884, %v1927
        %v1934 = vadd.f32 %v1885, %v1928
        %v1935 = vadd.f32 %v1886, %v1929
        %1936 = vrot.lane.b32.xlu0 %v1612, 110
        %v1937 = vpop.permute.xlu0 %1936
        %1938 = vrot.lane.b32.xlu0 %v1613, 110
        %v1939 = vpop.permute.xlu0 %1938
        %1940 = vrot.lane.b32.xlu0 %v1614, 110
        %v1941 = vpop.permute.xlu0 %1940
        %1942 = vrot.lane.b32.xlu0 %v1615, 110
        %v1943 = vpop.permute.xlu0 %1942
        %1944 = vrot.lane.b32.xlu0 %v1616, 110
        %v1945 = vpop.permute.xlu0 %1944
        %1946 = vrot.lane.b32.xlu0 %v1617, 110
        %v1947 = vpop.permute.xlu0 %1946
        %v1948 = vsel %vm1288, %v1937, %v1939
        %v1949 = vsel %vm1288, %v1939, %v1941
        %v1950 = vsel %vm1288, %v1943, %v1945
        %v1951 = vsel %vm1288, %v1945, %v1947
        %v1958 = vsel %vm1294, %v1941, 0.0
        %v1959 = vsel %vm1294, %v1947, 0.0
        %s1960 = scalar_lea.vmem %s4, 112
        %v1961 = vld [vmem:[%s1960] sm:$0xff]
        %v1962 = vld [vmem:[%s1960 + $0x8] sm:$0xff]
        %1964 = vset.pattern.permute.xlu0 0
        %1965 = vperm.xlu0 %1964, %v1961
        %v1966 = vpop.permute.xlu0 %1965
        %1969 = vset.pattern.permute.xlu0 0
        %1970 = vperm.xlu0 %1969, %v1962
        %v1971 = vpop.permute.xlu0 %1970
        %v1973 = vmul.f32 %v1948, %v1966
        %v1974 = vmul.f32 %v1949, %v1966
        %v1975 = vmul.f32 %v1958, %v1966
        %v1976 = vmul.f32 %v1950, %v1971
        %v1977 = vmul.f32 %v1951, %v1971
        %v1978 = vmul.f32 %v1959, %v1971
        %v1979 = vadd.f32 %v1930, %v1973
        %v1980 = vadd.f32 %v1931, %v1974
        %v1981 = vadd.f32 %v1932, %v1975
        %v1982 = vadd.f32 %v1933, %v1976
        %v1983 = vadd.f32 %v1934, %v1977
        %v1984 = vadd.f32 %v1935, %v1978
        %1985 = vrot.lane.b32.xlu0 %v1612, 109
        %v1986 = vpop.permute.xlu0 %1985
        %1987 = vrot.lane.b32.xlu0 %v1613, 109
        %v1988 = vpop.permute.xlu0 %1987
        %1989 = vrot.lane.b32.xlu0 %v1614, 109
        %v1990 = vpop.permute.xlu0 %1989
        %1991 = vrot.lane.b32.xlu0 %v1615, 109
        %v1992 = vpop.permute.xlu0 %1991
        %1993 = vrot.lane.b32.xlu0 %v1616, 109
        %v1994 = vpop.permute.xlu0 %1993
        %1995 = vrot.lane.b32.xlu0 %v1617, 109
        %v1996 = vpop.permute.xlu0 %1995
        %v1997 = vsel %vm1415, %v1986, %v1988
        %v1998 = vsel %vm1415, %v1988, %v1990
        %v1999 = vsel %vm1415, %v1992, %v1994
        %v2000 = vsel %vm1415, %v1994, %v1996
        %v2007 = vsel %vm1421, %v1990, 0.0
        %v2008 = vsel %vm1421, %v1996, 0.0
        %s2009 = scalar_lea.vmem %s4, 128
        %v2010 = vld [vmem:[%s2009] sm:$0xff]
        %v2011 = vld [vmem:[%s2009 + $0x8] sm:$0xff]
        %2013 = vset.pattern.permute.xlu0 0
        %2014 = vperm.xlu0 %2013, %v2010
        %v2015 = vpop.permute.xlu0 %2014
        %2018 = vset.pattern.permute.xlu0 0
        %2019 = vperm.xlu0 %2018, %v2011
        %v2020 = vpop.permute.xlu0 %2019
        %v2022 = vmul.f32 %v1997, %v2015
        %v2023 = vmul.f32 %v1998, %v2015
        %v2024 = vmul.f32 %v2007, %v2015
        %v2025 = vmul.f32 %v1999, %v2020
        %v2026 = vmul.f32 %v2000, %v2020
        %v2027 = vmul.f32 %v2008, %v2020
        %v2028 = vadd.f32 %v1979, %v2022
        %v2029 = vadd.f32 %v1980, %v2023
        %v2030 = vadd.f32 %v1981, %v2024
        %v2031 = vadd.f32 %v1982, %v2025
        %v2032 = vadd.f32 %v1983, %v2026
        %v2033 = vadd.f32 %v1984, %v2027
        %v2034 = vld [vmem:[%s5] sm:$0xff]
        %v2035 = vld [vmem:[%s5 + $0x8] sm:$0xff]
        %2037 = vset.pattern.permute.xlu0 0
        %2038 = vperm.xlu0 %2037, %v2034
        %v2039 = vpop.permute.xlu0 %2038
        %2042 = vset.pattern.permute.xlu0 0
        %2043 = vperm.xlu0 %2042, %v2035
        %v2044 = vpop.permute.xlu0 %2043
        %v2046 = vadd.f32 %v2028, %v2039
        %v2047 = vadd.f32 %v2029, %v2039
        %v2048 = vadd.f32 %v2030, %v2039
        %v2049 = vadd.f32 %v2031, %v2044
        %v2050 = vadd.f32 %v2032, %v2044
        %v2051 = vadd.f32 %v2033, %v2044
        %v2052 = vxor.u32 %v2046, 2147483648
        %v2053 = vxor.u32 %v2047, 2147483648
        %v2054 = vxor.u32 %v2048, 2147483648
        %v2055 = vxor.u32 %v2049, 2147483648
        %v2056 = vxor.u32 %v2050, 2147483648
        %v2057 = vxor.u32 %v2051, 2147483648
        %v2058 = vmul.f32 %v2052, 1.442695
        %v2059 = vpow.pop %v2058
        %v2060 = vmul.f32 %v2053, 1.442695
        %v2061 = vpow.pop %v2060
        %v2062 = vmul.f32 %v2054, 1.442695
        %v2063 = vpow.pop %v2062
        %v2064 = vmul.f32 %v2055, 1.442695
        %v2065 = vpow.pop %v2064
        %v2066 = vmul.f32 %v2056, 1.442695
        %v2067 = vpow.pop %v2066
        %v2068 = vmul.f32 %v2057, 1.442695
        %v2069 = vpow.pop %v2068
        %v2070 = vadd.f32 %v2059, 1.0
        %v2071 = vadd.f32 %v2061, 1.0
        %v2072 = vadd.f32 %v2063, 1.0
        %v2073 = vadd.f32 %v2065, 1.0
        %v2074 = vadd.f32 %v2067, 1.0
        %v2075 = vadd.f32 %v2069, 1.0
        %v2076 = vrcp.pop %v2070
        %v2077 = vmul.f32 1.0, %v2076
        %v2078 = vrcp.pop %v2071
        %v2079 = vmul.f32 1.0, %v2078
        %v2080 = vrcp.pop %v2072
        %v2081 = vmul.f32 1.0, %v2080
        %v2082 = vrcp.pop %v2073
        %v2083 = vmul.f32 1.0, %v2082
        %v2084 = vrcp.pop %v2074
        %v2085 = vmul.f32 1.0, %v2084
        %v2086 = vrcp.pop %v2075
        %v2087 = vmul.f32 1.0, %v2086
        %v2088 = vmul.f32 %v2046, %v2077
        %v2089 = vmul.f32 %v2047, %v2079
        %v2090 = vmul.f32 %v2048, %v2081
        %v2091 = vmul.f32 %v2049, %v2083
        %v2092 = vmul.f32 %v2050, %v2085
        %v2093 = vmul.f32 %v2051, %v2087
        %v2094 = vmul.f32 %v2088, %v1600
        %v2095 = vmul.f32 %v2089, %v1604
        %v2096 = vmul.f32 %v2090, %v1608
        %v2097 = vmul.f32 %v2091, %v1600
        %v2098 = vmul.f32 %v2092, %v1604
        %v2099 = vmul.f32 %v2093, %v1608
        %v2100 = vadd.f32 %v2094, %v2095
        %vm2101 = vcmask 556032
        %v2102 = vsel %vm2101, %v2096, 0.0
        %v2103 = vadd.f32 %v2100, %v2102
        %2104 = vadd.xlane.f32.xlu0 %v2103
        %v2105 = vpop.xlane.xlu0 %2104
        %v2106 = vadd.f32 %v2097, %v2098
        %v2107 = vsel %vm2101, %v2099, 0.0
        %v2108 = vadd.f32 %v2106, %v2107
        %2109 = vadd.xlane.f32.xlu0 %v2108
        %v2110 = vpop.xlane.xlu0 %2109
        %v2111 = vmul.f32 %v2105, 0.00390625
        %v2112 = vmul.f32 %v2110, 0.00390625
        %v2113 = vld [vmem:[%s6] sm:$0xff]
        %v2114 = vld [vmem:[%s6 + $0x8] sm:$0xff]
        %v2115 = vmul.f32 %v2113, %v2111
        %v2116 = vmul.f32 %v2114, %v2112
        %v2117 = vsel %vm794, %v2115, 0.0
        %v2118 = vsel %vm794, %v2116, 0.0
        %v2119 = vadd.f32 %v2117, %v2118
        %v2120 = vrot.slane %v2119, 4
        %v2121 = vadd.f32 %v2119, %v2120
        %v2122 = vrot.slane %v2121, 2
        %v2123 = vadd.f32 %v2121, %v2122
        %v2124 = vrot.slane %v2123, 1
        %v2125 = vadd.f32 %v2123, %v2124
        %v2126 = vld [vmem:[#allocation2] sm:$0x1]
        %v2127 = vadd.f32 %v2125, %v2126
        %v2128 = vxor.u32 %v2127, 2147483648
        %v2129 = vmul.f32 %v2128, 1.442695
        %v2130 = vpow.pop %v2129
        %v2131 = vadd.f32 %v2130, 1.0
        %v2132 = vrcp.pop %v2131
        %v2133 = vmul.f32 1.0, %v2132
        %v2134 = vmul.f32 %v2127, %v2133
        %v2135 = vld [vmem:[%s8] sm:$0xff]
        %v2136 = vld [vmem:[%s8 + $0x8] sm:$0xff]
        %v2137 = vlaneseq
        %v2138 = vshrl.u32 %v2137, 7
        %v2139 = vsub.s32 0, %v2138
        %v2140 = vrot.slane %v2134, %v2139
        %v2141 = vmul.f32 %v2135, %v2140
        %v2142 = vmul.f32 %v2136, %v2140
        %v2143 = vadd.f32 %v2141, 0.0
        %v2144 = vadd.f32 %v2142, 0.0
        %v2145 = vld [vmem:[%s9] sm:$0xff]
        %v2146 = vld [vmem:[%s9 + $0x8] sm:$0xff]
        %v2147 = vadd.f32 %v2143, %v2145
        %v2148 = vadd.f32 %v2144, %v2146
        %v2149 = vxor.u32 %v2147, 2147483648
        %v2150 = vxor.u32 %v2148, 2147483648
        %v2151 = vmul.f32 %v2149, 1.442695
        %v2152 = vpow.pop %v2151
        %v2153 = vmul.f32 %v2150, 1.442695
        %v2154 = vpow.pop %v2153
        %v2155 = vadd.f32 %v2152, 1.0
        %v2156 = vadd.f32 %v2154, 1.0
        %v2157 = vrcp.pop %v2155
        %v2158 = vmul.f32 1.0, %v2157
        %v2159 = vrcp.pop %v2156
        %v2160 = vmul.f32 1.0, %v2159
        %2162 = vset.pattern.permute.xlu0 0
        %2163 = vperm.xlu0 %2162, %v2158
        %v2164 = vpop.permute.xlu0 %2163
        %2167 = vset.pattern.permute.xlu0 0
        %2168 = vperm.xlu0 %2167, %v2160
        %v2169 = vpop.permute.xlu0 %2168
        %v2171 = vmul.f32 %v2094, %v2164
        %v2172 = vmul.f32 %v2095, %v2164
        %v2173 = vmul.f32 %v2096, %v2164
        %v2174 = vmul.f32 %v2097, %v2169
        %v2175 = vmul.f32 %v2098, %v2169
        %v2176 = vmul.f32 %v2099, %v2169
        %v2177 = vld [vmem:[%s10] sm:$0x3]
        %v2178 = vpack.c.bf16 %v2174, %v2171
        %v2179 = vpack.c.bf16 %v2175, %v2172
        %v2180 = vpack.c.bf16 %v2176, %v2173
        %v2181 = vld [vmem:[%s11] sm:$0xf]
        %2183 = vset.pattern.permute.xlu0 0
        %2184 = vperm.xlu0 %2183, %v2181
        %v2185 = vpop.permute.xlu0 %2184
        %vm2187 = vcmask 130048
        %v2189 = vsel %vm2187, %v2177, 0
        %2191 = vmatprep.subr.bf16.mxu0 0
        %2192 = vmatpush1.bf16.msra.mxu0 0
        %2193 = vmatprep.subr.bf16.mxu0 0
        %2194 = vmatpush1.bf16.msra.mxu0 0
        %2195 = vmatprep.subr.bf16.mxu0 0
        %2196 = vmatpush1.bf16.msra.mxu0 0
        %2197 = vmatprep.subr.bf16.mxu0 0
        %2198 = vmatpush1.bf16.msra.mxu0 0
        %2199 = vmatprep.subr.bf16.mxu0 0
        %2200 = vmatpush1.bf16.msra.mxu0 0
        %2201 = vmatprep.subr.bf16.mxu0 0
        %2202 = vmatpush1.bf16.msra.mxu0 0
        %2203 = vmatprep.subr.bf16.mxu0 0
        %2204 = vmatpush1.bf16.msra.mxu0 0
        %2205 = vmatprep.subr.bf16.mxu0 %v2179
        %2206 = vmatpush1.bf16.msra.mxu0 %v2178
        %2207 = vmatprep.subr.bf16.mxu0 0
        %2208 = vmatpush2.bf16.msra.mxu0 0
        %2209 = vmatprep.subr.bf16.mxu0 0
        %2210 = vmatpush2.bf16.msra.mxu0 0
        %2211 = vmatprep.subr.bf16.mxu0 0
        %2212 = vmatpush2.bf16.msra.mxu0 0
        %2213 = vmatprep.subr.bf16.mxu0 0
        %2214 = vmatpush2.bf16.msra.mxu0 0
        %2215 = vmatprep.subr.bf16.mxu0 0
        %2216 = vmatpush2.bf16.msra.mxu0 0
        %2217 = vmatprep.subr.bf16.mxu0 0
        %2218 = vmatpush2.bf16.msra.mxu0 0
        %2219 = vmatprep.subr.bf16.mxu0 0
        %2220 = vmatpush2.bf16.msra.mxu0 0
        %2221 = vmatprep.subr.bf16.mxu0 0
        %2222 = vmatpush2.bf16.msra.mxu0 0
        %2223 = vmatprep.mubr.bf16.mxu0 0
        %2224 = vmatmul.mubr.bf16.gmra.mxu0 %v2189
        %v2225 = vpop.f32.mrf.mxu0
        %v2226 = vadd.f32 %v2185, %v2225
        %v2227 = vpop.f32.mrf.mxu0
        %v2228 = vadd.f32 %v2185, %v2227
        %v2229 = vpop.f32.mrf.mxu0
        %v2230 = vpop.f32.mrf.mxu0
        %2231 = vdwg.mxu0
        %2232 = vmatprep.subr.bf16.mxu0 0
        %2233 = vmatpush1.bf16.msra.mxu0 0
        %2234 = vmatprep.subr.bf16.mxu0 0
        %2235 = vmatpush1.bf16.msra.mxu0 0
        %2236 = vmatprep.subr.bf16.mxu0 0
        %2237 = vmatpush1.bf16.msra.mxu0 0
        %2238 = vmatprep.subr.bf16.mxu0 0
        %2239 = vmatpush1.bf16.msra.mxu0 0
        %2240 = vmatprep.subr.bf16.mxu0 0
        %2241 = vmatpush1.bf16.msra.mxu0 0
        %2242 = vmatprep.subr.bf16.mxu0 0
        %2243 = vmatpush1.bf16.msra.mxu0 0
        %2244 = vmatprep.subr.bf16.mxu0 0
        %2245 = vmatpush1.bf16.msra.mxu0 0
        %2246 = vmatprep.subr.bf16.mxu0 0
        %2247 = vmatpush1.bf16.msra.mxu0 %v2180
        %2248 = vmatprep.subr.bf16.mxu0 0
        %2249 = vmatpush2.bf16.msra.mxu0 0
        %2250 = vmatprep.subr.bf16.mxu0 0
        %2251 = vmatpush2.bf16.msra.mxu0 0
        %2252 = vmatprep.subr.bf16.mxu0 0
        %2253 = vmatpush2.bf16.msra.mxu0 0
        %2254 = vmatprep.subr.bf16.mxu0 0
        %2255 = vmatpush2.bf16.msra.mxu0 0
        %2256 = vmatprep.subr.bf16.mxu0 0
        %2257 = vmatpush2.bf16.msra.mxu0 0
        %2258 = vmatprep.subr.bf16.mxu0 0
        %2259 = vmatpush2.bf16.msra.mxu0 0
        %2260 = vmatprep.subr.bf16.mxu0 0
        %2261 = vmatpush2.bf16.msra.mxu0 0
        %2262 = vmatprep.subr.bf16.mxu0 0
        %2263 = vmatpush2.bf16.msra.mxu0 0
        %2264 = vmatprep.mubr.bf16.mxu0 0
        %2265 = vmatmul.mubr.bf16.gmra.mxu0 %v2189
        %v2266 = vpop.f32.mrf.mxu0
        %v2267 = vadd.f32 %v2185, %v2266
        %v2268 = vpop.f32.mrf.mxu0
        %v2269 = vpop.f32.mrf.mxu0
        %v2270 = vpop.f32.mrf.mxu0
        %2271 = vdwg.mxu0
        %v2272 = vadd.f32 %v2226, %v415
        %v2273 = vadd.f32 %v2228, %v420
        %v2274 = vadd.f32 %v2267, %v416
        %v2277 = vcombine.low %v2272, %v2273
        %2279 = vst [vmem:[%s408] sm:$0xff] %v2277
        %vm2280 = vcmask 551936
        %2281 = vst.msk [vmem:[%s408 + $0x8] sm:$0xf] %vm2280, %v2274
        %s2282 = sand.u32 %s293, 1
        %s2283 = scalar_lea.sflag [#allocation4], %s2282
        %s2284 = sand.u32 %s293, 1
        %s2285 = smul.addr %s2284, 12
        %s2286 = scalar_lea.vmem [#allocation3], %s2285
        // Predicated region
        $region69: #{tpu_custom_call.1} parent=67 // pred_check
          %p2287 = pneg %p303
        $region70: #{tpu_custom_call.1} parent=67 // pred_check_branch
          %2289 = sbr.rel (%p2287) target = $region72
        $region71: #{tpu_custom_call.1} parent=67 // pred_region
          %s2291 = ssub.s32 192, 192
          %2292 = vsyncadd %s2283, %s2291
          %s2293 = smul.addr %s28, 3
          %s2294 = smul.addr %s2293, 64
          %s2295 = scalar_lea.hbm %s12, %s2294
          %s2297 = sshll.u32 %s2286, 4
          %s2298 = int_to_ptr.vmem [resolvable:$true] %s2297
          %2300 = dma.vmem_to_hbm [thread:$0]  %s2298, 192, %s2295, %s2283
        $region72: #{tpu_custom_call.1} parent=67 // pred_fallthru
          _
      $region68: #{tpu_custom_call.1} parent=5 // pred_fallthru
        _
      %p2301 = scmp.le.s32.totalorder 2, %s23
      // Predicated region
      $region73: #{tpu_custom_call.1} parent=5 // pred_check
        %p2302 = pneg %p2301
      $region74: #{tpu_custom_call.1} parent=5 // pred_check_branch
        %2304 = sbr.rel (%p2302) target = $region76
      $region75: #{tpu_custom_call.1} parent=5 // pred_region
        %s2305 = ssub.s32 %s23, 2
        // Predicated region
        $region77: #{tpu_custom_call.1} parent=75 // pred_check
          %p2306 = pneg %p309
        $region78: #{tpu_custom_call.1} parent=75 // pred_check_branch
          %2308 = sbr.rel (%p2306) target = $region80
        $region79: #{tpu_custom_call.1} parent=75 // pred_region
          %s2309 = sand.u32 %s294, 1
          %s2310 = scalar_lea.sflag [#allocation4], %s2309
          %s2311 = sand.u32 %s294, 1
          %s2312 = smul.addr %s2311, 12
          %s2313 = scalar_lea.vmem [#allocation3], %s2312
          %2314 = dma.done %s2310, 192
        $region80: #{tpu_custom_call.1} parent=75 // pred_fallthru
          _
      $region76: #{tpu_custom_call.1} parent=5 // pred_fallthru
        _
    $region6: #{tpu_custom_call.1} parent=1 // loop_footer
      %s27 = sadd.s32 1, %s23
    $region7: #{tpu_custom_call.1} parent=1 // loop_footer_branch
      %22 = sbr.rel target = $region3
    $region8: #{tpu_custom_call.1} parent=1 // loop_exit
      _
    %2315 = vsyncpa [#allocation4], 1
    %s2316 = scalar_lea.sflag [#allocation4], 1
    %2317 = vsyncpa %s2316, 1

</llo_original>
